<compile_context>
chip_gen: v7x
topology: tpu7x:2x2x1
jax: 0.10.0
libtpu: 0.0.40
codegen_flags: <defaults>
</compile_context>

<pallas_src>
import functools

import jax
import jax.numpy as jnp
from jax.experimental import pallas as pl
from jax.experimental.pallas import tpu as pltpu

WEIGHT_DTYPE = jnp.bfloat16   # MXU operand dtype (accumulation stays f32)
_LANE = 128
_SUBLANE = 8
_MAX_BATCH_TILE = 256         # 128-256 keeps per-tile activations/spills cheap


def _round_up(x, m):
    return ((x + m - 1) // m) * m


# ----------------------------- Pallas kernel -------------------------------- #
def _mlp_kernel(n_labels,
                x_ref,
                w1_ref, b1_ref,
                w2_ref, b2_ref,
                w21_ref, b21_ref,
                w3_ref, b3_ref,
                w31_ref, b31_ref,
                w4_ref, b4_ref,
                out_ref):
    """One batch tile: (TB, walk_len) -> (TB, padded_labels) log-probs."""

    def dense(h, w_ref, b_ref):
        # bf16 x bf16 MXU matmul, f32 accumulation, f32 bias add.
        return jnp.dot(h.astype(w_ref.dtype), w_ref[...],
                       preferred_element_type=jnp.float32) + b_ref[...]

    h = x_ref[...]
    h = jnp.maximum(dense(h, w1_ref, b1_ref), 0.0)     # (TB, 768)
    h = jnp.maximum(dense(h, w2_ref, b2_ref), 0.0)     # (TB, 512)
    h = jnp.maximum(dense(h, w21_ref, b21_ref), 0.0)   # (TB, 384)
    h = jnp.maximum(dense(h, w3_ref, b3_ref), 0.0)     # (TB, 128)
    h = jnp.maximum(dense(h, w31_ref, b31_ref), 0.0)   # (TB, 128)
    logits = dense(h, w4_ref, b4_ref)                  # (TB, 128) padded labels

    # Mask padded label lanes so they don't corrupt the softmax normalizer.
    lane = jax.lax.broadcasted_iota(jnp.int32, logits.shape, 1)
    logits = jnp.where(lane < n_labels, logits, -jnp.inf)

    # log_softmax over the label axis (max-shift trick), lane-dense store.
    m = jnp.max(logits, axis=1, keepdims=True)
    shifted = logits - m
    lse = jnp.log(jnp.sum(jnp.exp(shifted), axis=1, keepdims=True))
    out_ref[...] = shifted - lse


# ------------------------------ wrapper ------------------------------------- #
@functools.partial(jax.jit, static_argnames=("n_labels",))
def wide_basic_net_forward(x, packed_params, *, n_labels):
    """x: (B, walk_length) f32.
    packed_params: list of (W, b), W (in_pad, out_pad) bf16, b (1, out_pad) f32."""
    batch, f_in = x.shape
    p_out = packed_params[-1][0].shape[1]

    # Batch tiling: TB is a multiple of 8 (sublanes), capped at _MAX_BATCH_TILE.
    bp = _round_up(batch, _SUBLANE)
    if bp > _MAX_BATCH_TILE:
        tb = _MAX_BATCH_TILE
        bp = _round_up(batch, tb)
    else:
        tb = bp
    xp = x if bp == batch else jnp.pad(x, ((0, bp - batch), (0, 0)))

    flat_inputs = [xp]
    in_specs = [pl.BlockSpec((tb, f_in), lambda i: (i, 0))]
    flops = 0
    bytes_acc = xp.size * xp.dtype.itemsize + bp * p_out * 4
    for w, b in packed_params:
        flat_inputs += [w, b]
        # Full-array blocks with constant index_map -> loaded once, stay resident.
        in_specs.append(pl.BlockSpec(w.shape, lambda i: (0, 0)))
        in_specs.append(pl.BlockSpec(b.shape, lambda i: (0, 0)))
        flops += 2 * bp * w.shape[0] * w.shape[1]
        bytes_acc += w.size * w.dtype.itemsize + b.size * b.dtype.itemsize

    out = pl.pallas_call(
        functools.partial(_mlp_kernel, n_labels),
        out_shape=jax.ShapeDtypeStruct((bp, p_out), jnp.float32),
        grid=(bp // tb,),
        in_specs=in_specs,
        out_specs=pl.BlockSpec((tb, p_out), lambda i: (i, 0)),
        compiler_params=pltpu.CompilerParams(
            dimension_semantics=("parallel",)),
        cost_estimate=pl.CostEstimate(
            flops=flops,
            transcendentals=bp * p_out,
            bytes_accessed=bytes_acc),
    )(*flat_inputs)

    return out[:batch, :n_labels]


# --------------------------- parameter handling ------------------------------ #
def init_params(key, walk_length, n_labels):
    """nn.Linear-style init; weights stored transposed (in, out), biases (1, out)."""
    dims = [walk_length, 700, 500, 300, 100, 30, n_labels]
    params = []
    for i in range(len(dims) - 1):
        fan_in, fan_out = dims[i], dims[i + 1]
        key, kw, kb = jax.random.split(key, 3)
        bound = 1.0 / (fan_in ** 0.5)
        w = jax.random.uniform(kw, (fan_in, fan_out), jnp.float32, -bound, bound)
        b = jax.random.uniform(kb, (1, fan_out), jnp.float32, -bound, bound)
        params.append((w, b))
    return params


def pack_params(params):
    """Zero-pad every layer width to a 128-lane multiple; cast weights to WEIGHT_DTYPE."""
    packed = []
    in_pad = params[0][0].shape[0]          # input width stays as-is (full-dim block)
    for w, b in params:
        out_pad = _round_up(w.shape[1], _LANE)
        wp = jnp.zeros((in_pad, out_pad), WEIGHT_DTYPE)
        wp = wp.at[: w.shape[0], : w.shape[1]].set(w.astype(WEIGHT_DTYPE))
        bp = jnp.zeros((1, out_pad), jnp.float32).at[:, : b.shape[1]].set(b)
        packed.append((wp, bp))
        in_pad = out_pad                    # next layer's (padded) input width
    return packed


# ------------------------- pure-JAX reference -------------------------------- #
def reference_forward(x, packed_params, n_labels):
    """Reference using the same packed (padded, bf16-weight) parameters."""
    h = x
    n = len(packed_params)
    for i, (w, b) in enumerate(packed_params):
        y = jnp.dot(h.astype(w.dtype), w, preferred_element_type=jnp.float32) + b
        h = jnp.maximum(y, 0.0) if i < n - 1 else y
    return jax.nn.log_softmax(h[:, :n_labels], axis=1)


if __name__ == "__main__":
    WALK_LENGTH = 32      # input feature size (walk_length)
    N_LABELS = 4          # len(labels)
    BATCH = 2

    key = jax.random.PRNGKey(0)
    key, kx = jax.random.split(key)
    x = jax.random.normal(kx, (BATCH, WALK_LENGTH), jnp.float32)

    params = init_params(key, WALK_LENGTH, N_LABELS)
    packed = pack_params(params)

    out = wide_basic_net_forward(x, packed, n_labels=N_LABELS)
    out = jax.block_until_ready(out)

    ref = reference_forward(x, packed, N_LABELS)
    assert out.shape == (BATCH, N_LABELS)
    assert jnp.allclose(out, ref, atol=1e-4, rtol=1e-4), "Pallas output mismatch vs reference"

    print("KERNEL_OK")
</pallas_src>

<mosaic_0001>
module attributes {stable_mosaic.version = 11 : i64} {
  func.func @_mlp_kernel(%arg0: i32, %arg1: memref<8x32xf32, #tpu.memory_space<vmem>>, %arg2: memref<32x768xbf16, #tpu.memory_space<vmem>>, %arg3: memref<1x768xf32, #tpu.memory_space<vmem>>, %arg4: memref<768x512xbf16, #tpu.memory_space<vmem>>, %arg5: memref<1x512xf32, #tpu.memory_space<vmem>>, %arg6: memref<512x384xbf16, #tpu.memory_space<vmem>>, %arg7: memref<1x384xf32, #tpu.memory_space<vmem>>, %arg8: memref<384x128xbf16, #tpu.memory_space<vmem>>, %arg9: memref<1x128xf32, #tpu.memory_space<vmem>>, %arg10: memref<128x128xbf16, #tpu.memory_space<vmem>>, %arg11: memref<1x128xf32, #tpu.memory_space<vmem>>, %arg12: memref<128x128xbf16, #tpu.memory_space<vmem>>, %arg13: memref<1x128xf32, #tpu.memory_space<vmem>>, %arg14: memref<8x128xf32, #tpu.memory_space<vmem>>) attributes {dimension_semantics = [#tpu.dimension_semantics<parallel>], iteration_bounds = array<i64: 1>, scalar_prefetch = 0 : i64, scratch_operands = 0 : i64, tpu.core_type = #tpu.core_type<tc>, window_params = [{transform_indices = @transform_0, window_bounds = array<i64: 8, 32>}, {pipeline_mode = #tpu.pipeline_mode<synchronous>, transform_indices = @transform_1, window_bounds = array<i64: 32, 768>}, {pipeline_mode = #tpu.pipeline_mode<synchronous>, transform_indices = @transform_2, window_bounds = array<i64: 1, 768>}, {pipeline_mode = #tpu.pipeline_mode<synchronous>, transform_indices = @transform_3, window_bounds = array<i64: 768, 512>}, {pipeline_mode = #tpu.pipeline_mode<synchronous>, transform_indices = @transform_4, window_bounds = array<i64: 1, 512>}, {pipeline_mode = #tpu.pipeline_mode<synchronous>, transform_indices = @transform_5, window_bounds = array<i64: 512, 384>}, {pipeline_mode = #tpu.pipeline_mode<synchronous>, transform_indices = @transform_6, window_bounds = array<i64: 1, 384>}, {pipeline_mode = #tpu.pipeline_mode<synchronous>, transform_indices = @transform_7, window_bounds = array<i64: 384, 128>}, {pipeline_mode = #tpu.pipeline_mode<synchronous>, transform_indices = @transform_8, window_bounds = array<i64: 1, 128>}, {pipeline_mode = #tpu.pipeline_mode<synchronous>, transform_indices = @transform_9, window_bounds = array<i64: 128, 128>}, {pipeline_mode = #tpu.pipeline_mode<synchronous>, transform_indices = @transform_10, window_bounds = array<i64: 1, 128>}, {pipeline_mode = #tpu.pipeline_mode<synchronous>, transform_indices = @transform_11, window_bounds = array<i64: 128, 128>}, {pipeline_mode = #tpu.pipeline_mode<synchronous>, transform_indices = @transform_12, window_bounds = array<i64: 1, 128>}, {transform_indices = @transform_13, window_bounds = array<i64: 8, 128>}]} {
    %c0 = arith.constant 0 : index
    %c0_0 = arith.constant 0 : index
    %0 = vector.load %arg1[%c0, %c0_0] : memref<8x32xf32, #tpu.memory_space<vmem>>, vector<8x32xf32>
    %1 = arith.truncf %0 : vector<8x32xf32> to vector<8x32xbf16>
    %c0_1 = arith.constant 0 : index
    %c0_2 = arith.constant 0 : index
    %2 = vector.load %arg2[%c0_1, %c0_2] : memref<32x768xbf16, #tpu.memory_space<vmem>>, vector<32x768xbf16>
    %cst = arith.constant dense<0.000000e+00> : vector<8x768xf32>
    %3 = tpu.matmul %1, %2, %cst {dimension_numbers = #tpu.dot_dimension_numbers<[1], [0], [0], [1], [0, 0, 1, 1], [], []>} : vector<8x32xbf16>, vector<32x768xbf16>, vector<8x768xf32> -> vector<8x768xf32>
    %c0_3 = arith.constant 0 : index
    %c0_4 = arith.constant 0 : index
    %4 = vector.load %arg3[%c0_3, %c0_4] : memref<1x768xf32, #tpu.memory_space<vmem>>, vector<1x768xf32>
    %5 = vector.broadcast %4 : vector<1x768xf32> to vector<8x768xf32>
    %6 = arith.addf %3, %5 : vector<8x768xf32>
    %cst_5 = arith.constant 0.000000e+00 : f32
    %7 = vector.broadcast %cst_5 : f32 to vector<8x768xf32>
    %8 = arith.maximumf %6, %7 : vector<8x768xf32>
    %9 = arith.truncf %8 : vector<8x768xf32> to vector<8x768xbf16>
    %c0_6 = arith.constant 0 : index
    %c0_7 = arith.constant 0 : index
    %10 = vector.load %arg4[%c0_6, %c0_7] : memref<768x512xbf16, #tpu.memory_space<vmem>>, vector<768x512xbf16>
    %cst_8 = arith.constant dense<0.000000e+00> : vector<8x512xf32>
    %11 = tpu.matmul %9, %10, %cst_8 {dimension_numbers = #tpu.dot_dimension_numbers<[1], [0], [0], [1], [0, 0, 1, 1], [], []>} : vector<8x768xbf16>, vector<768x512xbf16>, vector<8x512xf32> -> vector<8x512xf32>
    %c0_9 = arith.constant 0 : index
    %c0_10 = arith.constant 0 : index
    %12 = vector.load %arg5[%c0_9, %c0_10] : memref<1x512xf32, #tpu.memory_space<vmem>>, vector<1x512xf32>
    %13 = vector.broadcast %12 : vector<1x512xf32> to vector<8x512xf32>
    %14 = arith.addf %11, %13 : vector<8x512xf32>
    %cst_11 = arith.constant 0.000000e+00 : f32
    %15 = vector.broadcast %cst_11 : f32 to vector<8x512xf32>
    %16 = arith.maximumf %14, %15 : vector<8x512xf32>
    %17 = arith.truncf %16 : vector<8x512xf32> to vector<8x512xbf16>
    %c0_12 = arith.constant 0 : index
    %c0_13 = arith.constant 0 : index
    %18 = vector.load %arg6[%c0_12, %c0_13] : memref<512x384xbf16, #tpu.memory_space<vmem>>, vector<512x384xbf16>
    %cst_14 = arith.constant dense<0.000000e+00> : vector<8x384xf32>
    %19 = tpu.matmul %17, %18, %cst_14 {dimension_numbers = #tpu.dot_dimension_numbers<[1], [0], [0], [1], [0, 0, 1, 1], [], []>} : vector<8x512xbf16>, vector<512x384xbf16>, vector<8x384xf32> -> vector<8x384xf32>
    %c0_15 = arith.constant 0 : index
    %c0_16 = arith.constant 0 : index
    %20 = vector.load %arg7[%c0_15, %c0_16] : memref<1x384xf32, #tpu.memory_space<vmem>>, vector<1x384xf32>
    %21 = vector.broadcast %20 : vector<1x384xf32> to vector<8x384xf32>
    %22 = arith.addf %19, %21 : vector<8x384xf32>
    %cst_17 = arith.constant 0.000000e+00 : f32
    %23 = vector.broadcast %cst_17 : f32 to vector<8x384xf32>
    %24 = arith.maximumf %22, %23 : vector<8x384xf32>
    %25 = arith.truncf %24 : vector<8x384xf32> to vector<8x384xbf16>
    %c0_18 = arith.constant 0 : index
    %c0_19 = arith.constant 0 : index
    %26 = vector.load %arg8[%c0_18, %c0_19] : memref<384x128xbf16, #tpu.memory_space<vmem>>, vector<384x128xbf16>
    %cst_20 = arith.constant dense<0.000000e+00> : vector<8x128xf32>
    %27 = tpu.matmul %25, %26, %cst_20 {dimension_numbers = #tpu.dot_dimension_numbers<[1], [0], [0], [1], [0, 0, 1, 1], [], []>} : vector<8x384xbf16>, vector<384x128xbf16>, vector<8x128xf32> -> vector<8x128xf32>
    %c0_21 = arith.constant 0 : index
    %c0_22 = arith.constant 0 : index
    %28 = vector.load %arg9[%c0_21, %c0_22] : memref<1x128xf32, #tpu.memory_space<vmem>>, vector<1x128xf32>
    %29 = vector.broadcast %28 : vector<1x128xf32> to vector<8x128xf32>
    %30 = arith.addf %27, %29 : vector<8x128xf32>
    %cst_23 = arith.constant 0.000000e+00 : f32
    %31 = vector.broadcast %cst_23 : f32 to vector<8x128xf32>
    %32 = arith.maximumf %30, %31 : vector<8x128xf32>
    %33 = arith.truncf %32 : vector<8x128xf32> to vector<8x128xbf16>
    %c0_24 = arith.constant 0 : index
    %c0_25 = arith.constant 0 : index
    %34 = vector.load %arg10[%c0_24, %c0_25] : memref<128x128xbf16, #tpu.memory_space<vmem>>, vector<128x128xbf16>
    %cst_26 = arith.constant dense<0.000000e+00> : vector<8x128xf32>
    %35 = tpu.matmul %33, %34, %cst_26 {dimension_numbers = #tpu.dot_dimension_numbers<[1], [0], [0], [1], [0, 0, 1, 1], [], []>} : vector<8x128xbf16>, vector<128x128xbf16>, vector<8x128xf32> -> vector<8x128xf32>
    %c0_27 = arith.constant 0 : index
    %c0_28 = arith.constant 0 : index
    %36 = vector.load %arg11[%c0_27, %c0_28] : memref<1x128xf32, #tpu.memory_space<vmem>>, vector<1x128xf32>
    %37 = vector.broadcast %36 : vector<1x128xf32> to vector<8x128xf32>
    %38 = arith.addf %35, %37 : vector<8x128xf32>
    %cst_29 = arith.constant 0.000000e+00 : f32
    %39 = vector.broadcast %cst_29 : f32 to vector<8x128xf32>
    %40 = arith.maximumf %38, %39 : vector<8x128xf32>
    %41 = arith.truncf %40 : vector<8x128xf32> to vector<8x128xbf16>
    %c0_30 = arith.constant 0 : index
    %c0_31 = arith.constant 0 : index
    %42 = vector.load %arg12[%c0_30, %c0_31] : memref<128x128xbf16, #tpu.memory_space<vmem>>, vector<128x128xbf16>
    %cst_32 = arith.constant dense<0.000000e+00> : vector<8x128xf32>
    %43 = tpu.matmul %41, %42, %cst_32 {dimension_numbers = #tpu.dot_dimension_numbers<[1], [0], [0], [1], [0, 0, 1, 1], [], []>} : vector<8x128xbf16>, vector<128x128xbf16>, vector<8x128xf32> -> vector<8x128xf32>
    %c0_33 = arith.constant 0 : index
    %c0_34 = arith.constant 0 : index
    %44 = vector.load %arg13[%c0_33, %c0_34] : memref<1x128xf32, #tpu.memory_space<vmem>>, vector<1x128xf32>
    %45 = vector.broadcast %44 : vector<1x128xf32> to vector<8x128xf32>
    %46 = arith.addf %43, %45 : vector<8x128xf32>
    %47 = tpu.iota {dimensions = array<i32: 1>} : vector<8x128xi32>
    %c4_i32 = arith.constant 4 : i32
    %48 = vector.broadcast %c4_i32 : i32 to vector<8x128xi32>
    %49 = arith.cmpi slt, %47, %48 : vector<8x128xi32>
    %cst_35 = arith.constant 0xFF800000 : f32
    %50 = vector.broadcast %cst_35 : f32 to vector<8x128xf32>
    %51 = arith.select %49, %46, %50 : vector<8x128xi1>, vector<8x128xf32>
    %cst_36 = arith.constant dense<0xFF800000> : vector<8xf32>
    %52 = vector.multi_reduction <maximumf>, %51, %cst_36 [1] : vector<8x128xf32> to vector<8xf32>
    %53 = vector.shape_cast %52 : vector<8xf32> to vector<8x1xf32>
    %54 = vector.broadcast %53 : vector<8x1xf32> to vector<8x128xf32>
    %55 = arith.subf %51, %54 : vector<8x128xf32>
    %56 = math.exp %55 : vector<8x128xf32>
    %cst_37 = arith.constant dense<0.000000e+00> : vector<8xf32>
    %57 = vector.multi_reduction <add>, %56, %cst_37 [1] : vector<8x128xf32> to vector<8xf32>
    %58 = vector.shape_cast %57 : vector<8xf32> to vector<8x1xf32>
    %59 = math.log %58 : vector<8x1xf32>
    %60 = vector.broadcast %59 : vector<8x1xf32> to vector<8x128xf32>
    %61 = arith.subf %55, %60 : vector<8x128xf32>
    %c0_38 = arith.constant 0 : index
    %c0_39 = arith.constant 0 : index
    %62 = vector.load %arg14[%c0_38, %c0_39] : memref<8x128xf32, #tpu.memory_space<vmem>>, vector<8x128xf32>
    tpu.vector_store %arg14[%c0_38, %c0_39], %61 {strides = array<i32>} : memref<8x128xf32, #tpu.memory_space<vmem>>, vector<8x128xf32>,
    return
  }
  func.func @transform_0(%arg0: i32) -> (i32, i32) {
    %c0_i32 = arith.constant 0 : i32
    %c0_i32_0 = arith.constant 0 : i32
    return %arg0, %c0_i32 : i32, i32
  }
  func.func @transform_1(%arg0: i32) -> (i32, i32) {
    %c0_i32 = arith.constant 0 : i32
    %c0_i32_0 = arith.constant 0 : i32
    %c0_i32_1 = arith.constant 0 : i32
    return %c0_i32, %c0_i32_0 : i32, i32
  }
  func.func @transform_2(%arg0: i32) -> (i32, i32) {
    %c0_i32 = arith.constant 0 : i32
    %c0_i32_0 = arith.constant 0 : i32
    %c0_i32_1 = arith.constant 0 : i32
    return %c0_i32, %c0_i32_0 : i32, i32
  }
  func.func @transform_3(%arg0: i32) -> (i32, i32) {
    %c0_i32 = arith.constant 0 : i32
    %c0_i32_0 = arith.constant 0 : i32
    %c0_i32_1 = arith.constant 0 : i32
    return %c0_i32, %c0_i32_0 : i32, i32
  }
  func.func @transform_4(%arg0: i32) -> (i32, i32) {
    %c0_i32 = arith.constant 0 : i32
    %c0_i32_0 = arith.constant 0 : i32
    %c0_i32_1 = arith.constant 0 : i32
    return %c0_i32, %c0_i32_0 : i32, i32
  }
  func.func @transform_5(%arg0: i32) -> (i32, i32) {
    %c0_i32 = arith.constant 0 : i32
    %c0_i32_0 = arith.constant 0 : i32
    %c0_i32_1 = arith.constant 0 : i32
    return %c0_i32, %c0_i32_0 : i32, i32
  }
  func.func @transform_6(%arg0: i32) -> (i32, i32) {
    %c0_i32 = arith.constant 0 : i32
    %c0_i32_0 = arith.constant 0 : i32
    %c0_i32_1 = arith.constant 0 : i32
    return %c0_i32, %c0_i32_0 : i32, i32
  }
  func.func @transform_7(%arg0: i32) -> (i32, i32) {
    %c0_i32 = arith.constant 0 : i32
    %c0_i32_0 = arith.constant 0 : i32
    %c0_i32_1 = arith.constant 0 : i32
    return %c0_i32, %c0_i32_0 : i32, i32
  }
  func.func @transform_8(%arg0: i32) -> (i32, i32) {
    %c0_i32 = arith.constant 0 : i32
    %c0_i32_0 = arith.constant 0 : i32
    %c0_i32_1 = arith.constant 0 : i32
    return %c0_i32, %c0_i32_0 : i32, i32
  }
  func.func @transform_9(%arg0: i32) -> (i32, i32) {
    %c0_i32 = arith.constant 0 : i32
    %c0_i32_0 = arith.constant 0 : i32
    %c0_i32_1 = arith.constant 0 : i32
    return %c0_i32, %c0_i32_0 : i32, i32
  }
  func.func @transform_10(%arg0: i32) -> (i32, i32) {
    %c0_i32 = arith.constant 0 : i32
    %c0_i32_0 = arith.constant 0 : i32
    %c0_i32_1 = arith.constant 0 : i32
    return %c0_i32, %c0_i32_0 : i32, i32
  }
  func.func @transform_11(%arg0: i32) -> (i32, i32) {
    %c0_i32 = arith.constant 0 : i32
    %c0_i32_0 = arith.constant 0 : i32
    %c0_i32_1 = arith.constant 0 : i32
    return %c0_i32, %c0_i32_0 : i32, i32
  }
  func.func @transform_12(%arg0: i32) -> (i32, i32) {
    %c0_i32 = arith.constant 0 : i32
    %c0_i32_0 = arith.constant 0 : i32
    %c0_i32_1 = arith.constant 0 : i32
    return %c0_i32, %c0_i32_0 : i32, i32
  }
  func.func @transform_13(%arg0: i32) -> (i32, i32) {
    %c0_i32 = arith.constant 0 : i32
    %c0_i32_0 = arith.constant 0 : i32
    return %arg0, %c0_i32 : i32, i32
  }
}

</mosaic_0001>

<llo_original>
// kernel: wide_basic_net_forward.1
$region0: #{wide_basic_net_forward.1}
  #allocation0 [shape = 'u32[]', space=smem, size = 0x4, offset = 0x4, fixed_abs, tag = 'smem constant byte address 0x4 - core index']
  #allocation1 [shape = 'u32[144,128]{1,0:T(1,128)}', space=vmem, size = 0x12000, scoped, tag = 'internal scratch']
  %s0 = inlined_call_operand.vmem [shape: f32[8,32], index: 0, kind: input, shape index: {}]
  %s1 = inlined_call_operand.hbm [shape: bf16[32,768], index: 1, kind: input, shape index: {}]
  %s2 = inlined_call_operand.vmem [shape: f32[1,768], index: 2, kind: input, shape index: {}]
  %s3 = inlined_call_operand.hbm [shape: bf16[768,512], index: 3, kind: input, shape index: {}]
  %s4 = inlined_call_operand.vmem [shape: f32[1,512], index: 4, kind: input, shape index: {}]
  %s5 = inlined_call_operand.hbm [shape: bf16[512,384], index: 5, kind: input, shape index: {}]
  %s6 = inlined_call_operand.vmem [shape: f32[1,384], index: 6, kind: input, shape index: {}]
  %s7 = inlined_call_operand.hbm [shape: bf16[384,128], index: 7, kind: input, shape index: {}]
  %s8 = inlined_call_operand.vmem [shape: f32[1,128], index: 8, kind: input, shape index: {}]
  %s9 = inlined_call_operand.hbm [shape: bf16[128,128], index: 9, kind: input, shape index: {}]
  %s10 = inlined_call_operand.vmem [shape: f32[1,128], index: 10, kind: input, shape index: {}]
  %s11 = inlined_call_operand.hbm [shape: bf16[128,128], index: 11, kind: input, shape index: {}]
  %s12 = inlined_call_operand.vmem [shape: f32[1,128], index: 12, kind: input, shape index: {}]
  %s13 = inlined_call_operand.vmem [shape: f32[8,128], index: 13, kind: output, shape index: {}]
  %s14 = sld [smem:[#allocation0]]
  $region86: #{wide_basic_net_forward.1} parent=0
    _
  %s16 = ssub.s32 1, %s14
  %s17 = scalar_select 0, %s16, %s14
  $region1: #{wide_basic_net_forward.1} parent=0
    #allocation2 [shape = 'u8[49152]{0}', space=vmem, size = 0xc000, scoped, tag = 'input window, operand 1, single buffered']
    #allocation3 [shape = 's32[1]{0}', space=sflag, size = 0x4, scoped, tag = 'scoped memory for wide_basic_net_forward.1']
    #allocation4 [shape = 'u8[786432]{0}', space=vmem, size = 0xc0000, scoped, tag = 'input window, operand 3, single buffered']
    #allocation5 [shape = 's32[1]{0}', space=sflag, size = 0x4, scoped, tag = 'scoped memory for wide_basic_net_forward.1']
    #allocation6 [shape = 'u8[393216]{0}', space=vmem, size = 0x60000, scoped, tag = 'input window, operand 5, single buffered']
    #allocation7 [shape = 'u8[98304]{0}', space=vmem, size = 0x18000, scoped, tag = 'input window, operand 7, single buffered']
    #allocation8 [shape = 's32[1]{0}', space=sflag, size = 0x4, scoped, tag = 'scoped memory for wide_basic_net_forward.1']
    #allocation9 [shape = 'u8[32768]{0}', space=vmem, size = 0x8000, scoped, tag = 'input window, operand 9, single buffered']
    #allocation10 [shape = 'u8[32768]{0}', space=vmem, size = 0x8000, scoped, tag = 'input window, operand 11, single buffered']
    #allocation11 [shape = 's32[1]{0}', space=sflag, size = 0x4, scoped, tag = 'scoped memory for wide_basic_net_forward.1']
    %18 = vsyncpa [#allocation3], 0
    %19 = vsyncpa [#allocation5], 0
    %20 = vsyncpa [#allocation8], 0
    %21 = vsyncpa [#allocation11], 0
    // Predicated region
    $region2: #{wide_basic_net_forward.1} parent=1 // pred_check
      _
    $region3: #{wide_basic_net_forward.1} parent=1 // pred_check_branch
      %23 = sbr.rel (0) target = $region5
    $region4: #{wide_basic_net_forward.1} parent=1 // pred_region
      _
    $region5: #{wide_basic_net_forward.1} parent=1 // pred_fallthru
      _
    // Predicated region
    $region6: #{wide_basic_net_forward.1} parent=1 // pred_check
      _
    $region7: #{wide_basic_net_forward.1} parent=1 // pred_check_branch
      %25 = sbr.rel (0) target = $region9
    $region8: #{wide_basic_net_forward.1} parent=1 // pred_region
      %s27 = ssub.s32 1536, 1536
      %28 = vsyncadd [#allocation3], %s27
      %s29 = sshll.u32 [#allocation2], 4
      %s30 = int_to_ptr.vmem [resolvable:$true] %s29
      %35 = dma.hbm_to_vmem [thread:$0]  %s1, 1536, %s30, [#allocation3], 384, 384, 24
    $region9: #{wide_basic_net_forward.1} parent=1 // pred_fallthru
      _
    // Predicated region
    $region10: #{wide_basic_net_forward.1} parent=1 // pred_check
      _
    $region11: #{wide_basic_net_forward.1} parent=1 // pred_check_branch
      %37 = sbr.rel (0) target = $region13
    $region12: #{wide_basic_net_forward.1} parent=1 // pred_region
      _
    $region13: #{wide_basic_net_forward.1} parent=1 // pred_fallthru
      _
    // Predicated region
    $region14: #{wide_basic_net_forward.1} parent=1 // pred_check
      _
    $region15: #{wide_basic_net_forward.1} parent=1 // pred_check_branch
      %39 = sbr.rel (0) target = $region17
    $region16: #{wide_basic_net_forward.1} parent=1 // pred_region
      %s41 = ssub.s32 24576, 24576
      %42 = vsyncadd [#allocation5], %s41
      %s43 = sshll.u32 [#allocation4], 4
      %s44 = int_to_ptr.vmem [resolvable:$true] %s43
      %49 = dma.hbm_to_vmem [thread:$0]  %s3, 24576, %s44, [#allocation5], 256, 256, 16
    $region17: #{wide_basic_net_forward.1} parent=1 // pred_fallthru
      _
    // Predicated region
    $region18: #{wide_basic_net_forward.1} parent=1 // pred_check
      _
    $region19: #{wide_basic_net_forward.1} parent=1 // pred_check_branch
      %51 = sbr.rel (0) target = $region21
    $region20: #{wide_basic_net_forward.1} parent=1 // pred_region
      _
    $region21: #{wide_basic_net_forward.1} parent=1 // pred_fallthru
      _
    // Predicated region
    $region22: #{wide_basic_net_forward.1} parent=1 // pred_check
      _
    $region23: #{wide_basic_net_forward.1} parent=1 // pred_check_branch
      %53 = sbr.rel (0) target = $region25
    $region24: #{wide_basic_net_forward.1} parent=1 // pred_region
      %s55 = ssub.s32 12288, 12288
      %56 = vsyncadd [#allocation5], %s55
      %s57 = sshll.u32 [#allocation6], 4
      %s58 = int_to_ptr.vmem [resolvable:$true] %s57
      %63 = dma.hbm_to_vmem [thread:$0]  %s5, 12288, %s58, [#allocation5], 192, 192, 12
    $region25: #{wide_basic_net_forward.1} parent=1 // pred_fallthru
      _
    // Predicated region
    $region26: #{wide_basic_net_forward.1} parent=1 // pred_check
      _
    $region27: #{wide_basic_net_forward.1} parent=1 // pred_check_branch
      %65 = sbr.rel (0) target = $region29
    $region28: #{wide_basic_net_forward.1} parent=1 // pred_region
      _
    $region29: #{wide_basic_net_forward.1} parent=1 // pred_fallthru
      _
    // Predicated region
    $region30: #{wide_basic_net_forward.1} parent=1 // pred_check
      _
    $region31: #{wide_basic_net_forward.1} parent=1 // pred_check_branch
      %67 = sbr.rel (0) target = $region33
    $region32: #{wide_basic_net_forward.1} parent=1 // pred_region
      %s69 = ssub.s32 3072, 3072
      %70 = vsyncadd [#allocation8], %s69
      %s71 = sshll.u32 [#allocation7], 4
      %s72 = int_to_ptr.vmem [resolvable:$true] %s71
      %77 = dma.hbm_to_vmem [thread:$0]  %s7, 3072, %s72, [#allocation8], 64, 64, 4
    $region33: #{wide_basic_net_forward.1} parent=1 // pred_fallthru
      _
    // Predicated region
    $region34: #{wide_basic_net_forward.1} parent=1 // pred_check
      _
    $region35: #{wide_basic_net_forward.1} parent=1 // pred_check_branch
      %79 = sbr.rel (0) target = $region37
    $region36: #{wide_basic_net_forward.1} parent=1 // pred_region
      _
    $region37: #{wide_basic_net_forward.1} parent=1 // pred_fallthru
      _
    // Predicated region
    $region38: #{wide_basic_net_forward.1} parent=1 // pred_check
      _
    $region39: #{wide_basic_net_forward.1} parent=1 // pred_check_branch
      %81 = sbr.rel (0) target = $region41
    $region40: #{wide_basic_net_forward.1} parent=1 // pred_region
      %s83 = ssub.s32 1024, 1024
      %84 = vsyncadd [#allocation8], %s83
      %s85 = sshll.u32 [#allocation9], 4
      %s86 = int_to_ptr.vmem [resolvable:$true] %s85
      %91 = dma.hbm_to_vmem [thread:$0]  %s9, 1024, %s86, [#allocation8], 64, 64, 4
    $region41: #{wide_basic_net_forward.1} parent=1 // pred_fallthru
      _
    // Predicated region
    $region42: #{wide_basic_net_forward.1} parent=1 // pred_check
      _
    $region43: #{wide_basic_net_forward.1} parent=1 // pred_check_branch
      %93 = sbr.rel (0) target = $region45
    $region44: #{wide_basic_net_forward.1} parent=1 // pred_region
      _
    $region45: #{wide_basic_net_forward.1} parent=1 // pred_fallthru
      _
    // Predicated region
    $region46: #{wide_basic_net_forward.1} parent=1 // pred_check
      _
    $region47: #{wide_basic_net_forward.1} parent=1 // pred_check_branch
      %95 = sbr.rel (0) target = $region49
    $region48: #{wide_basic_net_forward.1} parent=1 // pred_region
      %s97 = ssub.s32 1024, 1024
      %98 = vsyncadd [#allocation11], %s97
      %s99 = sshll.u32 [#allocation10], 4
      %s100 = int_to_ptr.vmem [resolvable:$true] %s99
      %105 = dma.hbm_to_vmem [thread:$0]  %s11, 1024, %s100, [#allocation11], 64, 64, 4
    $region49: #{wide_basic_net_forward.1} parent=1 // pred_fallthru
      _
    // Predicated region
    $region50: #{wide_basic_net_forward.1} parent=1 // pred_check
      _
    $region51: #{wide_basic_net_forward.1} parent=1 // pred_check_branch
      %107 = sbr.rel (0) target = $region53
    $region52: #{wide_basic_net_forward.1} parent=1 // pred_region
      _
    $region53: #{wide_basic_net_forward.1} parent=1 // pred_fallthru
      _
    // Predicated region
    $region54: #{wide_basic_net_forward.1} parent=1 // pred_check
      _
    $region55: #{wide_basic_net_forward.1} parent=1 // pred_check_branch
      %109 = sbr.rel (0) target = $region57
    $region56: #{wide_basic_net_forward.1} parent=1 // pred_region
      %110 = dma.done [#allocation3], 1536
    $region57: #{wide_basic_net_forward.1} parent=1 // pred_fallthru
      _
    // Predicated region
    $region58: #{wide_basic_net_forward.1} parent=1 // pred_check
      _
    $region59: #{wide_basic_net_forward.1} parent=1 // pred_check_branch
      %112 = sbr.rel (0) target = $region61
    $region60: #{wide_basic_net_forward.1} parent=1 // pred_region
      %113 = dma.done [#allocation5], 24576
    $region61: #{wide_basic_net_forward.1} parent=1 // pred_fallthru
      _
    // Predicated region
    $region62: #{wide_basic_net_forward.1} parent=1 // pred_check
      _
    $region63: #{wide_basic_net_forward.1} parent=1 // pred_check_branch
      %115 = sbr.rel (0) target = $region65
    $region64: #{wide_basic_net_forward.1} parent=1 // pred_region
      %116 = dma.done [#allocation5], 12288
    $region65: #{wide_basic_net_forward.1} parent=1 // pred_fallthru
      _
    // Predicated region
    $region66: #{wide_basic_net_forward.1} parent=1 // pred_check
      _
    $region67: #{wide_basic_net_forward.1} parent=1 // pred_check_branch
      %118 = sbr.rel (0) target = $region69
    $region68: #{wide_basic_net_forward.1} parent=1 // pred_region
      %119 = dma.done [#allocation8], 3072
    $region69: #{wide_basic_net_forward.1} parent=1 // pred_fallthru
      _
    // Predicated region
    $region70: #{wide_basic_net_forward.1} parent=1 // pred_check
      _
    $region71: #{wide_basic_net_forward.1} parent=1 // pred_check_branch
      %121 = sbr.rel (0) target = $region73
    $region72: #{wide_basic_net_forward.1} parent=1 // pred_region
      %122 = dma.done [#allocation8], 1024
    $region73: #{wide_basic_net_forward.1} parent=1 // pred_fallthru
      _
    // Predicated region
    $region74: #{wide_basic_net_forward.1} parent=1 // pred_check
      _
    $region75: #{wide_basic_net_forward.1} parent=1 // pred_check_branch
      %124 = sbr.rel (0) target = $region77
    $region76: #{wide_basic_net_forward.1} parent=1 // pred_region
      %125 = dma.done [#allocation11], 1024
    $region77: #{wide_basic_net_forward.1} parent=1 // pred_fallthru
      _
    %v127 = vld [vmem:[%s0] sm:$0xff]
    %v128 = vpack.c.bf16 %v127, %v127
    %v129 = vld [vmem:[#allocation2] sm:$0xff]
    %v130 = vld [vmem:[#allocation2 + $0x8] sm:$0xff]
    %v131 = vld [vmem:[#allocation2 + $0x10] sm:$0xff]
    %v132 = vld [vmem:[#allocation2 + $0x18] sm:$0xff]
    %v133 = vld [vmem:[#allocation2 + $0x20] sm:$0xff]
    %v134 = vld [vmem:[#allocation2 + $0x28] sm:$0xff]
    %v135 = vld [vmem:[#allocation2 + $0x30] sm:$0xff]
    %v136 = vld [vmem:[#allocation2 + $0x38] sm:$0xff]
    %v137 = vld [vmem:[#allocation2 + $0x40] sm:$0xff]
    %v138 = vld [vmem:[#allocation2 + $0x48] sm:$0xff]
    %v139 = vld [vmem:[#allocation2 + $0x50] sm:$0xff]
    %v140 = vld [vmem:[#allocation2 + $0x58] sm:$0xff]
    %v141 = vld [vmem:[%s2] sm:$0x3f]
    %v143 = vlaneseq
    %v144 = vshrl.u32 %v143, 7
    %v145 = vsub.s32 0, %v144
    %v146 = vrot.slane %v141, %v145
    %v147 = vlaneseq
    %v148 = vshrl.u32 %v147, 7
    %v149 = vsub.s32 1, %v148
    %v150 = vrot.slane %v141, %v149
    %v151 = vlaneseq
    %v152 = vshrl.u32 %v151, 7
    %v153 = vsub.s32 2, %v152
    %v154 = vrot.slane %v141, %v153
    %v155 = vlaneseq
    %v156 = vshrl.u32 %v155, 7
    %v157 = vsub.s32 3, %v156
    %v158 = vrot.slane %v141, %v157
    %v159 = vlaneseq
    %v160 = vshrl.u32 %v159, 7
    %v161 = vsub.s32 4, %v160
    %v162 = vrot.slane %v141, %v161
    %v163 = vlaneseq
    %v164 = vshrl.u32 %v163, 7
    %v165 = vsub.s32 5, %v164
    %v166 = vrot.slane %v141, %v165
    %v185 = vunpack.c.l.b16 %v129
    %v186 = vunpack.c.h.b16 %v129
    %v187 = vunpack.c.l.b16 %v130
    %v188 = vunpack.c.h.b16 %v130
    %v189 = vunpack.c.l.b16 %v131
    %v190 = vunpack.c.h.b16 %v131
    %v191 = vunpack.c.l.b16 %v132
    %v192 = vunpack.c.h.b16 %v132
    %v193 = vunpack.c.l.b16 %v133
    %v194 = vunpack.c.h.b16 %v133
    %v195 = vunpack.c.l.b16 %v134
    %v196 = vunpack.c.h.b16 %v134
    %v197 = vunpack.c.l.b16 %v135
    %v198 = vunpack.c.h.b16 %v135
    %v199 = vunpack.c.l.b16 %v136
    %v200 = vunpack.c.h.b16 %v136
    %v201 = vunpack.c.l.b16 %v137
    %v202 = vunpack.c.h.b16 %v137
    %v203 = vunpack.c.l.b16 %v138
    %v204 = vunpack.c.h.b16 %v138
    %v205 = vunpack.c.l.b16 %v139
    %v206 = vunpack.c.h.b16 %v139
    %v207 = vunpack.c.l.b16 %v140
    %v208 = vunpack.c.h.b16 %v140
    %v209 = vpack.c.b16 %v191, %v185
    %v210 = vpack.c.b16 %v192, %v186
    %v211 = vpack.c.b16 %v193, %v187
    %v212 = vpack.c.b16 %v194, %v188
    %v213 = vpack.c.b16 %v195, %v189
    %v214 = vpack.c.b16 %v196, %v190
    %v215 = vpack.c.b16 %v203, %v197
    %v216 = vpack.c.b16 %v204, %v198
    %v217 = vpack.c.b16 %v205, %v199
    %v218 = vpack.c.b16 %v206, %v200
    %v219 = vpack.c.b16 %v207, %v201
    %v220 = vpack.c.b16 %v208, %v202
    %vm233 = vcmask 261120
    %v235 = vsel %vm233, %v128, 0
    %237 = vmatprep.subr.bf16.mxu0 %v210
    %238 = vmatpush1.bf16.msra.mxu0 %v209
    %239 = vmatprep.subr.bf16.mxu0 %v216
    %240 = vmatpush1.bf16.msra.mxu0 %v215
    %241 = vmatprep.subr.bf16.mxu0 0
    %242 = vmatpush1.bf16.msra.mxu0 0
    %243 = vmatprep.subr.bf16.mxu0 0
    %244 = vmatpush1.bf16.msra.mxu0 0
    %245 = vmatprep.subr.bf16.mxu0 0
    %246 = vmatpush1.bf16.msra.mxu0 0
    %247 = vmatprep.subr.bf16.mxu0 0
    %248 = vmatpush1.bf16.msra.mxu0 0
    %249 = vmatprep.subr.bf16.mxu0 0
    %250 = vmatpush1.bf16.msra.mxu0 0
    %251 = vmatprep.subr.bf16.mxu0 0
    %252 = vmatpush1.bf16.msra.mxu0 0
    %253 = vmatprep.subr.bf16.mxu0 0
    %254 = vmatpush1.bf16.msra.mxu0 0
    %255 = vmatprep.subr.bf16.mxu0 0
    %256 = vmatpush1.bf16.msra.mxu0 0
    %257 = vmatprep.subr.bf16.mxu0 0
    %258 = vmatpush1.bf16.msra.mxu0 0
    %259 = vmatprep.subr.bf16.mxu0 0
    %260 = vmatpush1.bf16.msra.mxu0 0
    %261 = vmatprep.subr.bf16.mxu0 0
    %262 = vmatpush1.bf16.msra.mxu0 0
    %263 = vmatprep.subr.bf16.mxu0 0
    %264 = vmatpush1.bf16.msra.mxu0 0
    %265 = vmatprep.subr.bf16.mxu0 0
    %266 = vmatpush1.bf16.msra.mxu0 0
    %267 = vmatprep.subr.bf16.mxu0 0
    %268 = vmatpush1.bf16.msra.mxu0 0
    %269 = vmatprep.mubr.bf16.mxu0 0
    %270 = vmatmul.mubr.bf16.gmra.mrb[0].mxu0 %v235
    %v271 = vpop.f32.mrb[0].mxu0
    %v272 = vadd.f32 %v146, %v271
    %v273 = vpop.f32.mrb[0].mxu0
    %v274 = vadd.f32 %v150, %v273
    %v275 = vpop.f32.mrb[0].mxu0
    %v276 = vpop.f32.mrb[0].mxu0
    %277 = vdwg.mxu0
    %278 = vmatprep.subr.bf16.mxu0 %v212
    %279 = vmatpush1.bf16.msra.mxu0 %v211
    %280 = vmatprep.subr.bf16.mxu0 %v218
    %281 = vmatpush1.bf16.msra.mxu0 %v217
    %282 = vmatprep.subr.bf16.mxu0 0
    %283 = vmatpush1.bf16.msra.mxu0 0
    %284 = vmatprep.subr.bf16.mxu0 0
    %285 = vmatpush1.bf16.msra.mxu0 0
    %286 = vmatprep.subr.bf16.mxu0 0
    %287 = vmatpush1.bf16.msra.mxu0 0
    %288 = vmatprep.subr.bf16.mxu0 0
    %289 = vmatpush1.bf16.msra.mxu0 0
    %290 = vmatprep.subr.bf16.mxu0 0
    %291 = vmatpush1.bf16.msra.mxu0 0
    %292 = vmatprep.subr.bf16.mxu0 0
    %293 = vmatpush1.bf16.msra.mxu0 0
    %294 = vmatprep.subr.bf16.mxu0 0
    %295 = vmatpush1.bf16.msra.mxu0 0
    %296 = vmatprep.subr.bf16.mxu0 0
    %297 = vmatpush1.bf16.msra.mxu0 0
    %298 = vmatprep.subr.bf16.mxu0 0
    %299 = vmatpush1.bf16.msra.mxu0 0
    %300 = vmatprep.subr.bf16.mxu0 0
    %301 = vmatpush1.bf16.msra.mxu0 0
    %302 = vmatprep.subr.bf16.mxu0 0
    %303 = vmatpush1.bf16.msra.mxu0 0
    %304 = vmatprep.subr.bf16.mxu0 0
    %305 = vmatpush1.bf16.msra.mxu0 0
    %306 = vmatprep.subr.bf16.mxu0 0
    %307 = vmatpush1.bf16.msra.mxu0 0
    %308 = vmatprep.subr.bf16.mxu0 0
    %309 = vmatpush1.bf16.msra.mxu0 0
    %310 = vmatprep.mubr.bf16.mxu0 0
    %311 = vmatmul.mubr.bf16.gmra.mrb[0].mxu0 %v235
    %v312 = vpop.f32.mrb[0].mxu0
    %v313 = vadd.f32 %v154, %v312
    %v314 = vpop.f32.mrb[0].mxu0
    %v315 = vadd.f32 %v158, %v314
    %v316 = vpop.f32.mrb[0].mxu0
    %v317 = vpop.f32.mrb[0].mxu0
    %318 = vdwg.mxu0
    %319 = vmatprep.subr.bf16.mxu0 %v214
    %320 = vmatpush1.bf16.msra.mxu0 %v213
    %321 = vmatprep.subr.bf16.mxu0 %v220
    %322 = vmatpush1.bf16.msra.mxu0 %v219
    %323 = vmatprep.subr.bf16.mxu0 0
    %324 = vmatpush1.bf16.msra.mxu0 0
    %325 = vmatprep.subr.bf16.mxu0 0
    %326 = vmatpush1.bf16.msra.mxu0 0
    %327 = vmatprep.subr.bf16.mxu0 0
    %328 = vmatpush1.bf16.msra.mxu0 0
    %329 = vmatprep.subr.bf16.mxu0 0
    %330 = vmatpush1.bf16.msra.mxu0 0
    %331 = vmatprep.subr.bf16.mxu0 0
    %332 = vmatpush1.bf16.msra.mxu0 0
    %333 = vmatprep.subr.bf16.mxu0 0
    %334 = vmatpush1.bf16.msra.mxu0 0
    %335 = vmatprep.subr.bf16.mxu0 0
    %336 = vmatpush1.bf16.msra.mxu0 0
    %337 = vmatprep.subr.bf16.mxu0 0
    %338 = vmatpush1.bf16.msra.mxu0 0
    %339 = vmatprep.subr.bf16.mxu0 0
    %340 = vmatpush1.bf16.msra.mxu0 0
    %341 = vmatprep.subr.bf16.mxu0 0
    %342 = vmatpush1.bf16.msra.mxu0 0
    %343 = vmatprep.subr.bf16.mxu0 0
    %344 = vmatpush1.bf16.msra.mxu0 0
    %345 = vmatprep.subr.bf16.mxu0 0
    %346 = vmatpush1.bf16.msra.mxu0 0
    %347 = vmatprep.subr.bf16.mxu0 0
    %348 = vmatpush1.bf16.msra.mxu0 0
    %349 = vmatprep.subr.bf16.mxu0 0
    %350 = vmatpush1.bf16.msra.mxu0 0
    %351 = vmatprep.mubr.bf16.mxu0 0
    %352 = vmatmul.mubr.bf16.gmra.mrb[0].mxu0 %v235
    %v353 = vpop.f32.mrb[0].mxu0
    %v354 = vadd.f32 %v162, %v353
    %v355 = vpop.f32.mrb[0].mxu0
    %v356 = vadd.f32 %v166, %v355
    %v357 = vpop.f32.mrb[0].mxu0
    %v358 = vpop.f32.mrb[0].mxu0
    %359 = vdwg.mxu0
    %v360 = vmax.f32 %v272, 0.0
    %v361 = vmax.f32 %v274, 0.0
    %v362 = vmax.f32 %v313, 0.0
    %v363 = vmax.f32 %v315, 0.0
    %v364 = vmax.f32 %v354, 0.0
    %v365 = vmax.f32 %v356, 0.0
    %v366 = vpack.c.bf16 %v360, %v360
    %v367 = vpack.c.bf16 %v361, %v361
    %v368 = vpack.c.bf16 %v362, %v362
    %v369 = vpack.c.bf16 %v363, %v363
    %v370 = vpack.c.bf16 %v364, %v364
    %v371 = vpack.c.bf16 %v365, %v365
    %v372 = vld [vmem:[#allocation4] sm:$0xff]
    %v373 = vld [vmem:[#allocation4 + $0x8] sm:$0xff]
    %v374 = vld [vmem:[#allocation4 + $0x10] sm:$0xff]
    %v375 = vld [vmem:[#allocation4 + $0x18] sm:$0xff]
    %v376 = vld [vmem:[#allocation4 + $0x20] sm:$0xff]
    %v377 = vld [vmem:[#allocation4 + $0x28] sm:$0xff]
    %v378 = vld [vmem:[#allocation4 + $0x30] sm:$0xff]
    %v379 = vld [vmem:[#allocation4 + $0x38] sm:$0xff]
    %v380 = vld [vmem:[#allocation4 + $0x40] sm:$0xff]
    %v381 = vld [vmem:[#allocation4 + $0x48] sm:$0xff]
    %v382 = vld [vmem:[#allocation4 + $0x50] sm:$0xff]
    %v383 = vld [vmem:[#allocation4 + $0x58] sm:$0xff]
    %v384 = vld [vmem:[#allocation4 + $0x60] sm:$0xff]
    %v385 = vld [vmem:[#allocation4 + $0x68] sm:$0xff]
    %v386 = vld [vmem:[#allocation4 + $0x70] sm:$0xff]
    %v387 = vld [vmem:[#allocation4 + $0x78] sm:$0xff]
    %v388 = vld [vmem:[#allocation4 + $0x80] sm:$0xff]
    %v389 = vld [vmem:[#allocation4 + $0x88] sm:$0xff]
    %v390 = vld [vmem:[#allocation4 + $0x90] sm:$0xff]
    %v391 = vld [vmem:[#allocation4 + $0x98] sm:$0xff]
    %v392 = vld [vmem:[#allocation4 + $0xa0] sm:$0xff]
    %v393 = vld [vmem:[#allocation4 + $0xa8] sm:$0xff]
    %v394 = vld [vmem:[#allocation4 + $0xb0] sm:$0xff]
    %v395 = vld [vmem:[#allocation4 + $0xb8] sm:$0xff]
    %v396 = vld [vmem:[#allocation4 + $0xc0] sm:$0xff]
    %v397 = vld [vmem:[#allocation4 + $0xc8] sm:$0xff]
    %v398 = vld [vmem:[#allocation4 + $0xd0] sm:$0xff]
    %v399 = vld [vmem:[#allocation4 + $0xd8] sm:$0xff]
    %v400 = vld [vmem:[#allocation4 + $0xe0] sm:$0xff]
    %v401 = vld [vmem:[#allocation4 + $0xe8] sm:$0xff]
    %v402 = vld [vmem:[#allocation4 + $0xf0] sm:$0xff]
    %v403 = vld [vmem:[#allocation4 + $0xf8] sm:$0xff]
    %v404 = vld [vmem:[#allocation4 + $0x100] sm:$0xff]
    %v405 = vld [vmem:[#allocation4 + $0x108] sm:$0xff]
    %v406 = vld [vmem:[#allocation4 + $0x110] sm:$0xff]
    %v407 = vld [vmem:[#allocation4 + $0x118] sm:$0xff]
    %v408 = vld [vmem:[#allocation4 + $0x120] sm:$0xff]
    %v409 = vld [vmem:[#allocation4 + $0x128] sm:$0xff]
    %v410 = vld [vmem:[#allocation4 + $0x130] sm:$0xff]
    %v411 = vld [vmem:[#allocation4 + $0x138] sm:$0xff]
    %v412 = vld [vmem:[#allocation4 + $0x140] sm:$0xff]
    %v413 = vld [vmem:[#allocation4 + $0x148] sm:$0xff]
    %v414 = vld [vmem:[#allocation4 + $0x150] sm:$0xff]
    %v415 = vld [vmem:[#allocation4 + $0x158] sm:$0xff]
    %v416 = vld [vmem:[#allocation4 + $0x160] sm:$0xff]
    %v417 = vld [vmem:[#allocation4 + $0x168] sm:$0xff]
    %v418 = vld [vmem:[#allocation4 + $0x170] sm:$0xff]
    %v419 = vld [vmem:[#allocation4 + $0x178] sm:$0xff]
    %v420 = vld [vmem:[#allocation4 + $0x180] sm:$0xff]
    %v421 = vld [vmem:[#allocation4 + $0x188] sm:$0xff]
    %v422 = vld [vmem:[#allocation4 + $0x190] sm:$0xff]
    %v423 = vld [vmem:[#allocation4 + $0x198] sm:$0xff]
    %v424 = vld [vmem:[#allocation4 + $0x1a0] sm:$0xff]
    %v425 = vld [vmem:[#allocation4 + $0x1a8] sm:$0xff]
    %v426 = vld [vmem:[#allocation4 + $0x1b0] sm:$0xff]
    %v427 = vld [vmem:[#allocation4 + $0x1b8] sm:$0xff]
    %v428 = vld [vmem:[#allocation4 + $0x1c0] sm:$0xff]
    %v429 = vld [vmem:[#allocation4 + $0x1c8] sm:$0xff]
    %v430 = vld [vmem:[#allocation4 + $0x1d0] sm:$0xff]
    %v431 = vld [vmem:[#allocation4 + $0x1d8] sm:$0xff]
    %v432 = vld [vmem:[#allocation4 + $0x1e0] sm:$0xff]
    %v433 = vld [vmem:[#allocation4 + $0x1e8] sm:$0xff]
    %v434 = vld [vmem:[#allocation4 + $0x1f0] sm:$0xff]
    %v435 = vld [vmem:[#allocation4 + $0x1f8] sm:$0xff]
    %v436 = vld [vmem:[#allocation4 + $0x200] sm:$0xff]
    %v437 = vld [vmem:[#allocation4 + $0x208] sm:$0xff]
    %v438 = vld [vmem:[#allocation4 + $0x210] sm:$0xff]
    %v439 = vld [vmem:[#allocation4 + $0x218] sm:$0xff]
    %v440 = vld [vmem:[#allocation4 + $0x220] sm:$0xff]
    %v441 = vld [vmem:[#allocation4 + $0x228] sm:$0xff]
    %v442 = vld [vmem:[#allocation4 + $0x230] sm:$0xff]
    %v443 = vld [vmem:[#allocation4 + $0x238] sm:$0xff]
    %v444 = vld [vmem:[#allocation4 + $0x240] sm:$0xff]
    %v445 = vld [vmem:[#allocation4 + $0x248] sm:$0xff]
    %v446 = vld [vmem:[#allocation4 + $0x250] sm:$0xff]
    %v447 = vld [vmem:[#allocation4 + $0x258] sm:$0xff]
    %v448 = vld [vmem:[#allocation4 + $0x260] sm:$0xff]
    %v449 = vld [vmem:[#allocation4 + $0x268] sm:$0xff]
    %v450 = vld [vmem:[#allocation4 + $0x270] sm:$0xff]
    %v451 = vld [vmem:[#allocation4 + $0x278] sm:$0xff]
    %v452 = vld [vmem:[#allocation4 + $0x280] sm:$0xff]
    %v453 = vld [vmem:[#allocation4 + $0x288] sm:$0xff]
    %v454 = vld [vmem:[#allocation4 + $0x290] sm:$0xff]
    %v455 = vld [vmem:[#allocation4 + $0x298] sm:$0xff]
    %v456 = vld [vmem:[#allocation4 + $0x2a0] sm:$0xff]
    %v457 = vld [vmem:[#allocation4 + $0x2a8] sm:$0xff]
    %v458 = vld [vmem:[#allocation4 + $0x2b0] sm:$0xff]
    %v459 = vld [vmem:[#allocation4 + $0x2b8] sm:$0xff]
    %v460 = vld [vmem:[#allocation4 + $0x2c0] sm:$0xff]
    %v461 = vld [vmem:[#allocation4 + $0x2c8] sm:$0xff]
    %v462 = vld [vmem:[#allocation4 + $0x2d0] sm:$0xff]
    %v463 = vld [vmem:[#allocation4 + $0x2d8] sm:$0xff]
    %v464 = vld [vmem:[#allocation4 + $0x2e0] sm:$0xff]
    %v465 = vld [vmem:[#allocation4 + $0x2e8] sm:$0xff]
    %v466 = vld [vmem:[#allocation4 + $0x2f0] sm:$0xff]
    %v467 = vld [vmem:[#allocation4 + $0x2f8] sm:$0xff]
    %v468 = vld [vmem:[#allocation4 + $0x300] sm:$0xff]
    %v469 = vld [vmem:[#allocation4 + $0x308] sm:$0xff]
    %v470 = vld [vmem:[#allocation4 + $0x310] sm:$0xff]
    %v471 = vld [vmem:[#allocation4 + $0x318] sm:$0xff]
    %v472 = vld [vmem:[#allocation4 + $0x320] sm:$0xff]
    %v473 = vld [vmem:[#allocation4 + $0x328] sm:$0xff]
    %v474 = vld [vmem:[#allocation4 + $0x330] sm:$0xff]
    %v475 = vld [vmem:[#allocation4 + $0x338] sm:$0xff]
    %v476 = vld [vmem:[#allocation4 + $0x340] sm:$0xff]
    %v477 = vld [vmem:[#allocation4 + $0x348] sm:$0xff]
    %v478 = vld [vmem:[#allocation4 + $0x350] sm:$0xff]
    %v479 = vld [vmem:[#allocation4 + $0x358] sm:$0xff]
    %v480 = vld [vmem:[#allocation4 + $0x360] sm:$0xff]
    %v481 = vld [vmem:[#allocation4 + $0x368] sm:$0xff]
    %v482 = vld [vmem:[#allocation4 + $0x370] sm:$0xff]
    %v483 = vld [vmem:[#allocation4 + $0x378] sm:$0xff]
    %v484 = vld [vmem:[#allocation4 + $0x380] sm:$0xff]
    %v485 = vld [vmem:[#allocation4 + $0x388] sm:$0xff]
    %v486 = vld [vmem:[#allocation4 + $0x390] sm:$0xff]
    %v487 = vld [vmem:[#allocation4 + $0x398] sm:$0xff]
    %v488 = vld [vmem:[#allocation4 + $0x3a0] sm:$0xff]
    %v489 = vld [vmem:[#allocation4 + $0x3a8] sm:$0xff]
    %v490 = vld [vmem:[#allocation4 + $0x3b0] sm:$0xff]
    %v491 = vld [vmem:[#allocation4 + $0x3b8] sm:$0xff]
    %v492 = vld [vmem:[#allocation4 + $0x3c0] sm:$0xff]
    %v493 = vld [vmem:[#allocation4 + $0x3c8] sm:$0xff]
    %v494 = vld [vmem:[#allocation4 + $0x3d0] sm:$0xff]
    %v495 = vld [vmem:[#allocation4 + $0x3d8] sm:$0xff]
    %v496 = vld [vmem:[#allocation4 + $0x3e0] sm:$0xff]
    %v497 = vld [vmem:[#allocation4 + $0x3e8] sm:$0xff]
    %v498 = vld [vmem:[#allocation4 + $0x3f0] sm:$0xff]
    %v499 = vld [vmem:[#allocation4 + $0x3f8] sm:$0xff]
    %v500 = vld [vmem:[#allocation4 + $0x400] sm:$0xff]
    %v501 = vld [vmem:[#allocation4 + $0x408] sm:$0xff]
    %v502 = vld [vmem:[#allocation4 + $0x410] sm:$0xff]
    %v503 = vld [vmem:[#allocation4 + $0x418] sm:$0xff]
    %v504 = vld [vmem:[#allocation4 + $0x420] sm:$0xff]
    %v505 = vld [vmem:[#allocation4 + $0x428] sm:$0xff]
    %v506 = vld [vmem:[#allocation4 + $0x430] sm:$0xff]
    %v507 = vld [vmem:[#allocation4 + $0x438] sm:$0xff]
    %v508 = vld [vmem:[#allocation4 + $0x440] sm:$0xff]
    %v509 = vld [vmem:[#allocation4 + $0x448] sm:$0xff]
    %v510 = vld [vmem:[#allocation4 + $0x450] sm:$0xff]
    %v511 = vld [vmem:[#allocation4 + $0x458] sm:$0xff]
    %v512 = vld [vmem:[#allocation4 + $0x460] sm:$0xff]
    %v513 = vld [vmem:[#allocation4 + $0x468] sm:$0xff]
    %v514 = vld [vmem:[#allocation4 + $0x470] sm:$0xff]
    %v515 = vld [vmem:[#allocation4 + $0x478] sm:$0xff]
    %v516 = vld [vmem:[#allocation4 + $0x480] sm:$0xff]
    %v517 = vld [vmem:[#allocation4 + $0x488] sm:$0xff]
    %v518 = vld [vmem:[#allocation4 + $0x490] sm:$0xff]
    %v519 = vld [vmem:[#allocation4 + $0x498] sm:$0xff]
    %v520 = vld [vmem:[#allocation4 + $0x4a0] sm:$0xff]
    %v521 = vld [vmem:[#allocation4 + $0x4a8] sm:$0xff]
    %v522 = vld [vmem:[#allocation4 + $0x4b0] sm:$0xff]
    %v523 = vld [vmem:[#allocation4 + $0x4b8] sm:$0xff]
    %v524 = vld [vmem:[#allocation4 + $0x4c0] sm:$0xff]
    %v525 = vld [vmem:[#allocation4 + $0x4c8] sm:$0xff]
    %v526 = vld [vmem:[#allocation4 + $0x4d0] sm:$0xff]
    %v527 = vld [vmem:[#allocation4 + $0x4d8] sm:$0xff]
    %v528 = vld [vmem:[#allocation4 + $0x4e0] sm:$0xff]
    %v529 = vld [vmem:[#allocation4 + $0x4e8] sm:$0xff]
    %v530 = vld [vmem:[#allocation4 + $0x4f0] sm:$0xff]
    %v531 = vld [vmem:[#allocation4 + $0x4f8] sm:$0xff]
    %v532 = vld [vmem:[#allocation4 + $0x500] sm:$0xff]
    %v533 = vld [vmem:[#allocation4 + $0x508] sm:$0xff]
    %v534 = vld [vmem:[#allocation4 + $0x510] sm:$0xff]
    %v535 = vld [vmem:[#allocation4 + $0x518] sm:$0xff]
    %v536 = vld [vmem:[#allocation4 + $0x520] sm:$0xff]
    %v537 = vld [vmem:[#allocation4 + $0x528] sm:$0xff]
    %v538 = vld [vmem:[#allocation4 + $0x530] sm:$0xff]
    %v539 = vld [vmem:[#allocation4 + $0x538] sm:$0xff]
    %v540 = vld [vmem:[#allocation4 + $0x540] sm:$0xff]
    %v541 = vld [vmem:[#allocation4 + $0x548] sm:$0xff]
    %v542 = vld [vmem:[#allocation4 + $0x550] sm:$0xff]
    %v543 = vld [vmem:[#allocation4 + $0x558] sm:$0xff]
    %v544 = vld [vmem:[#allocation4 + $0x560] sm:$0xff]
    %v545 = vld [vmem:[#allocation4 + $0x568] sm:$0xff]
    %v546 = vld [vmem:[#allocation4 + $0x570] sm:$0xff]
    %v547 = vld [vmem:[#allocation4 + $0x578] sm:$0xff]
    %v548 = vld [vmem:[#allocation4 + $0x580] sm:$0xff]
    %v549 = vld [vmem:[#allocation4 + $0x588] sm:$0xff]
    %v550 = vld [vmem:[#allocation4 + $0x590] sm:$0xff]
    %v551 = vld [vmem:[#allocation4 + $0x598] sm:$0xff]
    %v552 = vld [vmem:[#allocation4 + $0x5a0] sm:$0xff]
    %v553 = vld [vmem:[#allocation4 + $0x5a8] sm:$0xff]
    %v554 = vld [vmem:[#allocation4 + $0x5b0] sm:$0xff]
    %v555 = vld [vmem:[#allocation4 + $0x5b8] sm:$0xff]
    %v556 = vld [vmem:[#allocation4 + $0x5c0] sm:$0xff]
    %v557 = vld [vmem:[#allocation4 + $0x5c8] sm:$0xff]
    %v558 = vld [vmem:[#allocation4 + $0x5d0] sm:$0xff]
    %v559 = vld [vmem:[#allocation4 + $0x5d8] sm:$0xff]
    %v560 = vld [vmem:[#allocation4 + $0x5e0] sm:$0xff]
    %v561 = vld [vmem:[#allocation4 + $0x5e8] sm:$0xff]
    %v562 = vld [vmem:[#allocation4 + $0x5f0] sm:$0xff]
    %v563 = vld [vmem:[#allocation4 + $0x5f8] sm:$0xff]
    %v564 = vld [vmem:[%s4] sm:$0xf]
    %v566 = vlaneseq
    %v567 = vshrl.u32 %v566, 7
    %v568 = vsub.s32 0, %v567
    %v569 = vrot.slane %v564, %v568
    %v570 = vlaneseq
    %v571 = vshrl.u32 %v570, 7
    %v572 = vsub.s32 1, %v571
    %v573 = vrot.slane %v564, %v572
    %v574 = vlaneseq
    %v575 = vshrl.u32 %v574, 7
    %v576 = vsub.s32 2, %v575
    %v577 = vrot.slane %v564, %v576
    %v578 = vlaneseq
    %v579 = vshrl.u32 %v578, 7
    %v580 = vsub.s32 3, %v579
    %v581 = vrot.slane %v564, %v580
    %v778 = vunpack.c.l.b16 %v372
    %v779 = vunpack.c.h.b16 %v372
    %v780 = vunpack.c.l.b16 %v373
    %v781 = vunpack.c.h.b16 %v373
    %v782 = vunpack.c.l.b16 %v374
    %v783 = vunpack.c.h.b16 %v374
    %v784 = vunpack.c.l.b16 %v375
    %v785 = vunpack.c.h.b16 %v375
    %v786 = vunpack.c.l.b16 %v376
    %v787 = vunpack.c.h.b16 %v376
    %v788 = vunpack.c.l.b16 %v377
    %v789 = vunpack.c.h.b16 %v377
    %v790 = vunpack.c.l.b16 %v378
    %v791 = vunpack.c.h.b16 %v378
    %v792 = vunpack.c.l.b16 %v379
    %v793 = vunpack.c.h.b16 %v379
    %v794 = vunpack.c.l.b16 %v380
    %v795 = vunpack.c.h.b16 %v380
    %v796 = vunpack.c.l.b16 %v381
    %v797 = vunpack.c.h.b16 %v381
    %v798 = vunpack.c.l.b16 %v382
    %v799 = vunpack.c.h.b16 %v382
    %v800 = vunpack.c.l.b16 %v383
    %v801 = vunpack.c.h.b16 %v383
    %v802 = vunpack.c.l.b16 %v384
    %v803 = vunpack.c.h.b16 %v384
    %v804 = vunpack.c.l.b16 %v385
    %v805 = vunpack.c.h.b16 %v385
    %v806 = vunpack.c.l.b16 %v386
    %v807 = vunpack.c.h.b16 %v386
    %v808 = vunpack.c.l.b16 %v387
    %v809 = vunpack.c.h.b16 %v387
    %v810 = vunpack.c.l.b16 %v388
    %v811 = vunpack.c.h.b16 %v388
    %v812 = vunpack.c.l.b16 %v389
    %v813 = vunpack.c.h.b16 %v389
    %v814 = vunpack.c.l.b16 %v390
    %v815 = vunpack.c.h.b16 %v390
    %v816 = vunpack.c.l.b16 %v391
    %v817 = vunpack.c.h.b16 %v391
    %v818 = vunpack.c.l.b16 %v392
    %v819 = vunpack.c.h.b16 %v392
    %v820 = vunpack.c.l.b16 %v393
    %v821 = vunpack.c.h.b16 %v393
    %v822 = vunpack.c.l.b16 %v394
    %v823 = vunpack.c.h.b16 %v394
    %v824 = vunpack.c.l.b16 %v395
    %v825 = vunpack.c.h.b16 %v395
    %v826 = vunpack.c.l.b16 %v396
    %v827 = vunpack.c.h.b16 %v396
    %v828 = vunpack.c.l.b16 %v397
    %v829 = vunpack.c.h.b16 %v397
    %v830 = vunpack.c.l.b16 %v398
    %v831 = vunpack.c.h.b16 %v398
    %v832 = vunpack.c.l.b16 %v399
    %v833 = vunpack.c.h.b16 %v399
    %v834 = vunpack.c.l.b16 %v400
    %v835 = vunpack.c.h.b16 %v400
    %v836 = vunpack.c.l.b16 %v401
    %v837 = vunpack.c.h.b16 %v401
    %v838 = vunpack.c.l.b16 %v402
    %v839 = vunpack.c.h.b16 %v402
    %v840 = vunpack.c.l.b16 %v403
    %v841 = vunpack.c.h.b16 %v403
    %v842 = vunpack.c.l.b16 %v404
    %v843 = vunpack.c.h.b16 %v404
    %v844 = vunpack.c.l.b16 %v405
    %v845 = vunpack.c.h.b16 %v405
    %v846 = vunpack.c.l.b16 %v406
    %v847 = vunpack.c.h.b16 %v406
    %v848 = vunpack.c.l.b16 %v407
    %v849 = vunpack.c.h.b16 %v407
    %v850 = vunpack.c.l.b16 %v408
    %v851 = vunpack.c.h.b16 %v408
    %v852 = vunpack.c.l.b16 %v409
    %v853 = vunpack.c.h.b16 %v409
    %v854 = vunpack.c.l.b16 %v410
    %v855 = vunpack.c.h.b16 %v410
    %v856 = vunpack.c.l.b16 %v411
    %v857 = vunpack.c.h.b16 %v411
    %v858 = vunpack.c.l.b16 %v412
    %v859 = vunpack.c.h.b16 %v412
    %v860 = vunpack.c.l.b16 %v413
    %v861 = vunpack.c.h.b16 %v413
    %v862 = vunpack.c.l.b16 %v414
    %v863 = vunpack.c.h.b16 %v414
    %v864 = vunpack.c.l.b16 %v415
    %v865 = vunpack.c.h.b16 %v415
    %v866 = vunpack.c.l.b16 %v416
    %v867 = vunpack.c.h.b16 %v416
    %v868 = vunpack.c.l.b16 %v417
    %v869 = vunpack.c.h.b16 %v417
    %v870 = vunpack.c.l.b16 %v418
    %v871 = vunpack.c.h.b16 %v418
    %v872 = vunpack.c.l.b16 %v419
    %v873 = vunpack.c.h.b16 %v419
    %v874 = vunpack.c.l.b16 %v420
    %v875 = vunpack.c.h.b16 %v420
    %v876 = vunpack.c.l.b16 %v421
    %v877 = vunpack.c.h.b16 %v421
    %v878 = vunpack.c.l.b16 %v422
    %v879 = vunpack.c.h.b16 %v422
    %v880 = vunpack.c.l.b16 %v423
    %v881 = vunpack.c.h.b16 %v423
    %v882 = vunpack.c.l.b16 %v424
    %v883 = vunpack.c.h.b16 %v424
    %v884 = vunpack.c.l.b16 %v425
    %v885 = vunpack.c.h.b16 %v425
    %v886 = vunpack.c.l.b16 %v426
    %v887 = vunpack.c.h.b16 %v426
    %v888 = vunpack.c.l.b16 %v427
    %v889 = vunpack.c.h.b16 %v427
    %v890 = vunpack.c.l.b16 %v428
    %v891 = vunpack.c.h.b16 %v428
    %v892 = vunpack.c.l.b16 %v429
    %v893 = vunpack.c.h.b16 %v429
    %v894 = vunpack.c.l.b16 %v430
    %v895 = vunpack.c.h.b16 %v430
    %v896 = vunpack.c.l.b16 %v431
    %v897 = vunpack.c.h.b16 %v431
    %v898 = vunpack.c.l.b16 %v432
    %v899 = vunpack.c.h.b16 %v432
    %v900 = vunpack.c.l.b16 %v433
    %v901 = vunpack.c.h.b16 %v433
    %v902 = vunpack.c.l.b16 %v434
    %v903 = vunpack.c.h.b16 %v434
    %v904 = vunpack.c.l.b16 %v435
    %v905 = vunpack.c.h.b16 %v435
    %v906 = vunpack.c.l.b16 %v436
    %v907 = vunpack.c.h.b16 %v436
    %v908 = vunpack.c.l.b16 %v437
    %v909 = vunpack.c.h.b16 %v437
    %v910 = vunpack.c.l.b16 %v438
    %v911 = vunpack.c.h.b16 %v438
    %v912 = vunpack.c.l.b16 %v439
    %v913 = vunpack.c.h.b16 %v439
    %v914 = vunpack.c.l.b16 %v440
    %v915 = vunpack.c.h.b16 %v440
    %v916 = vunpack.c.l.b16 %v441
    %v917 = vunpack.c.h.b16 %v441
    %v918 = vunpack.c.l.b16 %v442
    %v919 = vunpack.c.h.b16 %v442
    %v920 = vunpack.c.l.b16 %v443
    %v921 = vunpack.c.h.b16 %v443
    %v922 = vunpack.c.l.b16 %v444
    %v923 = vunpack.c.h.b16 %v444
    %v924 = vunpack.c.l.b16 %v445
    %v925 = vunpack.c.h.b16 %v445
    %v926 = vunpack.c.l.b16 %v446
    %v927 = vunpack.c.h.b16 %v446
    %v928 = vunpack.c.l.b16 %v447
    %v929 = vunpack.c.h.b16 %v447
    %v930 = vunpack.c.l.b16 %v448
    %v931 = vunpack.c.h.b16 %v448
    %v932 = vunpack.c.l.b16 %v449
    %v933 = vunpack.c.h.b16 %v449
    %v934 = vunpack.c.l.b16 %v450
    %v935 = vunpack.c.h.b16 %v450
    %v936 = vunpack.c.l.b16 %v451
    %v937 = vunpack.c.h.b16 %v451
    %v938 = vunpack.c.l.b16 %v452
    %v939 = vunpack.c.h.b16 %v452
    %v940 = vunpack.c.l.b16 %v453
    %v941 = vunpack.c.h.b16 %v453
    %v942 = vunpack.c.l.b16 %v454
    %v943 = vunpack.c.h.b16 %v454
    %v944 = vunpack.c.l.b16 %v455
    %v945 = vunpack.c.h.b16 %v455
    %v946 = vunpack.c.l.b16 %v456
    %v947 = vunpack.c.h.b16 %v456
    %v948 = vunpack.c.l.b16 %v457
    %v949 = vunpack.c.h.b16 %v457
    %v950 = vunpack.c.l.b16 %v458
    %v951 = vunpack.c.h.b16 %v458
    %v952 = vunpack.c.l.b16 %v459
    %v953 = vunpack.c.h.b16 %v459
    %v954 = vunpack.c.l.b16 %v460
    %v955 = vunpack.c.h.b16 %v460
    %v956 = vunpack.c.l.b16 %v461
    %v957 = vunpack.c.h.b16 %v461
    %v958 = vunpack.c.l.b16 %v462
    %v959 = vunpack.c.h.b16 %v462
    %v960 = vunpack.c.l.b16 %v463
    %v961 = vunpack.c.h.b16 %v463
    %v962 = vunpack.c.l.b16 %v464
    %v963 = vunpack.c.h.b16 %v464
    %v964 = vunpack.c.l.b16 %v465
    %v965 = vunpack.c.h.b16 %v465
    %v966 = vunpack.c.l.b16 %v466
    %v967 = vunpack.c.h.b16 %v466
    %v968 = vunpack.c.l.b16 %v467
    %v969 = vunpack.c.h.b16 %v467
    %v970 = vunpack.c.l.b16 %v468
    %v971 = vunpack.c.h.b16 %v468
    %v972 = vunpack.c.l.b16 %v469
    %v973 = vunpack.c.h.b16 %v469
    %v974 = vunpack.c.l.b16 %v470
    %v975 = vunpack.c.h.b16 %v470
    %v976 = vunpack.c.l.b16 %v471
    %v977 = vunpack.c.h.b16 %v471
    %v978 = vunpack.c.l.b16 %v472
    %v979 = vunpack.c.h.b16 %v472
    %v980 = vunpack.c.l.b16 %v473
    %v981 = vunpack.c.h.b16 %v473
    %v982 = vunpack.c.l.b16 %v474
    %v983 = vunpack.c.h.b16 %v474
    %v984 = vunpack.c.l.b16 %v475
    %v985 = vunpack.c.h.b16 %v475
    %v986 = vunpack.c.l.b16 %v476
    %v987 = vunpack.c.h.b16 %v476
    %v988 = vunpack.c.l.b16 %v477
    %v989 = vunpack.c.h.b16 %v477
    %v990 = vunpack.c.l.b16 %v478
    %v991 = vunpack.c.h.b16 %v478
    %v992 = vunpack.c.l.b16 %v479
    %v993 = vunpack.c.h.b16 %v479
    %v994 = vunpack.c.l.b16 %v480
    %v995 = vunpack.c.h.b16 %v480
    %v996 = vunpack.c.l.b16 %v481
    %v997 = vunpack.c.h.b16 %v481
    %v998 = vunpack.c.l.b16 %v482
    %v999 = vunpack.c.h.b16 %v482
    %v1000 = vunpack.c.l.b16 %v483
    %v1001 = vunpack.c.h.b16 %v483
    %v1002 = vunpack.c.l.b16 %v484
    %v1003 = vunpack.c.h.b16 %v484
    %v1004 = vunpack.c.l.b16 %v485
    %v1005 = vunpack.c.h.b16 %v485
    %v1006 = vunpack.c.l.b16 %v486
    %v1007 = vunpack.c.h.b16 %v486
    %v1008 = vunpack.c.l.b16 %v487
    %v1009 = vunpack.c.h.b16 %v487
    %v1010 = vunpack.c.l.b16 %v488
    %v1011 = vunpack.c.h.b16 %v488
    %v1012 = vunpack.c.l.b16 %v489
    %v1013 = vunpack.c.h.b16 %v489
    %v1014 = vunpack.c.l.b16 %v490
    %v1015 = vunpack.c.h.b16 %v490
    %v1016 = vunpack.c.l.b16 %v491
    %v1017 = vunpack.c.h.b16 %v491
    %v1018 = vunpack.c.l.b16 %v492
    %v1019 = vunpack.c.h.b16 %v492
    %v1020 = vunpack.c.l.b16 %v493
    %v1021 = vunpack.c.h.b16 %v493
    %v1022 = vunpack.c.l.b16 %v494
    %v1023 = vunpack.c.h.b16 %v494
    %v1024 = vunpack.c.l.b16 %v495
    %v1025 = vunpack.c.h.b16 %v495
    %v1026 = vunpack.c.l.b16 %v496
    %v1027 = vunpack.c.h.b16 %v496
    %v1028 = vunpack.c.l.b16 %v497
    %v1029 = vunpack.c.h.b16 %v497
    %v1030 = vunpack.c.l.b16 %v498
    %v1031 = vunpack.c.h.b16 %v498
    %v1032 = vunpack.c.l.b16 %v499
    %v1033 = vunpack.c.h.b16 %v499
    %v1034 = vunpack.c.l.b16 %v500
    %v1035 = vunpack.c.h.b16 %v500
    %v1036 = vunpack.c.l.b16 %v501
    %v1037 = vunpack.c.h.b16 %v501
    %v1038 = vunpack.c.l.b16 %v502
    %v1039 = vunpack.c.h.b16 %v502
    %v1040 = vunpack.c.l.b16 %v503
    %v1041 = vunpack.c.h.b16 %v503
    %v1042 = vunpack.c.l.b16 %v504
    %v1043 = vunpack.c.h.b16 %v504
    %v1044 = vunpack.c.l.b16 %v505
    %v1045 = vunpack.c.h.b16 %v505
    %v1046 = vunpack.c.l.b16 %v506
    %v1047 = vunpack.c.h.b16 %v506
    %v1048 = vunpack.c.l.b16 %v507
    %v1049 = vunpack.c.h.b16 %v507
    %v1050 = vunpack.c.l.b16 %v508
    %v1051 = vunpack.c.h.b16 %v508
    %v1052 = vunpack.c.l.b16 %v509
    %v1053 = vunpack.c.h.b16 %v509
    %v1054 = vunpack.c.l.b16 %v510
    %v1055 = vunpack.c.h.b16 %v510
    %v1056 = vunpack.c.l.b16 %v511
    %v1057 = vunpack.c.h.b16 %v511
    %v1058 = vunpack.c.l.b16 %v512
    %v1059 = vunpack.c.h.b16 %v512
    %v1060 = vunpack.c.l.b16 %v513
    %v1061 = vunpack.c.h.b16 %v513
    %v1062 = vunpack.c.l.b16 %v514
    %v1063 = vunpack.c.h.b16 %v514
    %v1064 = vunpack.c.l.b16 %v515
    %v1065 = vunpack.c.h.b16 %v515
    %v1066 = vunpack.c.l.b16 %v516
    %v1067 = vunpack.c.h.b16 %v516
    %v1068 = vunpack.c.l.b16 %v517
    %v1069 = vunpack.c.h.b16 %v517
    %v1070 = vunpack.c.l.b16 %v518
    %v1071 = vunpack.c.h.b16 %v518
    %v1072 = vunpack.c.l.b16 %v519
    %v1073 = vunpack.c.h.b16 %v519
    %v1074 = vunpack.c.l.b16 %v520
    %v1075 = vunpack.c.h.b16 %v520
    %v1076 = vunpack.c.l.b16 %v521
    %v1077 = vunpack.c.h.b16 %v521
    %v1078 = vunpack.c.l.b16 %v522
    %v1079 = vunpack.c.h.b16 %v522
    %v1080 = vunpack.c.l.b16 %v523
    %v1081 = vunpack.c.h.b16 %v523
    %v1082 = vunpack.c.l.b16 %v524
    %v1083 = vunpack.c.h.b16 %v524
    %v1084 = vunpack.c.l.b16 %v525
    %v1085 = vunpack.c.h.b16 %v525
    %v1086 = vunpack.c.l.b16 %v526
    %v1087 = vunpack.c.h.b16 %v526
    %v1088 = vunpack.c.l.b16 %v527
    %v1089 = vunpack.c.h.b16 %v527
    %v1090 = vunpack.c.l.b16 %v528
    %v1091 = vunpack.c.h.b16 %v528
    %v1092 = vunpack.c.l.b16 %v529
    %v1093 = vunpack.c.h.b16 %v529
    %v1094 = vunpack.c.l.b16 %v530
    %v1095 = vunpack.c.h.b16 %v530
    %v1096 = vunpack.c.l.b16 %v531
    %v1097 = vunpack.c.h.b16 %v531
    %v1098 = vunpack.c.l.b16 %v532
    %v1099 = vunpack.c.h.b16 %v532
    %v1100 = vunpack.c.l.b16 %v533
    %v1101 = vunpack.c.h.b16 %v533
    %v1102 = vunpack.c.l.b16 %v534
    %v1103 = vunpack.c.h.b16 %v534
    %v1104 = vunpack.c.l.b16 %v535
    %v1105 = vunpack.c.h.b16 %v535
    %v1106 = vunpack.c.l.b16 %v536
    %v1107 = vunpack.c.h.b16 %v536
    %v1108 = vunpack.c.l.b16 %v537
    %v1109 = vunpack.c.h.b16 %v537
    %v1110 = vunpack.c.l.b16 %v538
    %v1111 = vunpack.c.h.b16 %v538
    %v1112 = vunpack.c.l.b16 %v539
    %v1113 = vunpack.c.h.b16 %v539
    %v1114 = vunpack.c.l.b16 %v540
    %v1115 = vunpack.c.h.b16 %v540
    %v1116 = vunpack.c.l.b16 %v541
    %v1117 = vunpack.c.h.b16 %v541
    %v1118 = vunpack.c.l.b16 %v542
    %v1119 = vunpack.c.h.b16 %v542
    %v1120 = vunpack.c.l.b16 %v543
    %v1121 = vunpack.c.h.b16 %v543
    %v1122 = vunpack.c.l.b16 %v544
    %v1123 = vunpack.c.h.b16 %v544
    %v1124 = vunpack.c.l.b16 %v545
    %v1125 = vunpack.c.h.b16 %v545
    %v1126 = vunpack.c.l.b16 %v546
    %v1127 = vunpack.c.h.b16 %v546
    %v1128 = vunpack.c.l.b16 %v547
    %v1129 = vunpack.c.h.b16 %v547
    %v1130 = vunpack.c.l.b16 %v548
    %v1131 = vunpack.c.h.b16 %v548
    %v1132 = vunpack.c.l.b16 %v549
    %v1133 = vunpack.c.h.b16 %v549
    %v1134 = vunpack.c.l.b16 %v550
    %v1135 = vunpack.c.h.b16 %v550
    %v1136 = vunpack.c.l.b16 %v551
    %v1137 = vunpack.c.h.b16 %v551
    %v1138 = vunpack.c.l.b16 %v552
    %v1139 = vunpack.c.h.b16 %v552
    %v1140 = vunpack.c.l.b16 %v553
    %v1141 = vunpack.c.h.b16 %v553
    %v1142 = vunpack.c.l.b16 %v554
    %v1143 = vunpack.c.h.b16 %v554
    %v1144 = vunpack.c.l.b16 %v555
    %v1145 = vunpack.c.h.b16 %v555
    %v1146 = vunpack.c.l.b16 %v556
    %v1147 = vunpack.c.h.b16 %v556
    %v1148 = vunpack.c.l.b16 %v557
    %v1149 = vunpack.c.h.b16 %v557
    %v1150 = vunpack.c.l.b16 %v558
    %v1151 = vunpack.c.h.b16 %v558
    %v1152 = vunpack.c.l.b16 %v559
    %v1153 = vunpack.c.h.b16 %v559
    %v1154 = vunpack.c.l.b16 %v560
    %v1155 = vunpack.c.h.b16 %v560
    %v1156 = vunpack.c.l.b16 %v561
    %v1157 = vunpack.c.h.b16 %v561
    %v1158 = vunpack.c.l.b16 %v562
    %v1159 = vunpack.c.h.b16 %v562
    %v1160 = vunpack.c.l.b16 %v563
    %v1161 = vunpack.c.h.b16 %v563
    %v1162 = vpack.c.b16 %v782, %v778
    %v1163 = vpack.c.b16 %v783, %v779
    %v1164 = vpack.c.b16 %v784, %v780
    %v1165 = vpack.c.b16 %v785, %v781
    %v1166 = vpack.c.b16 %v790, %v786
    %v1167 = vpack.c.b16 %v791, %v787
    %v1168 = vpack.c.b16 %v792, %v788
    %v1169 = vpack.c.b16 %v793, %v789
    %v1170 = vpack.c.b16 %v798, %v794
    %v1171 = vpack.c.b16 %v799, %v795
    %v1172 = vpack.c.b16 %v800, %v796
    %v1173 = vpack.c.b16 %v801, %v797
    %v1174 = vpack.c.b16 %v806, %v802
    %v1175 = vpack.c.b16 %v807, %v803
    %v1176 = vpack.c.b16 %v808, %v804
    %v1177 = vpack.c.b16 %v809, %v805
    %v1178 = vpack.c.b16 %v814, %v810
    %v1179 = vpack.c.b16 %v815, %v811
    %v1180 = vpack.c.b16 %v816, %v812
    %v1181 = vpack.c.b16 %v817, %v813
    %v1182 = vpack.c.b16 %v822, %v818
    %v1183 = vpack.c.b16 %v823, %v819
    %v1184 = vpack.c.b16 %v824, %v820
    %v1185 = vpack.c.b16 %v825, %v821
    %v1186 = vpack.c.b16 %v830, %v826
    %v1187 = vpack.c.b16 %v831, %v827
    %v1188 = vpack.c.b16 %v832, %v828
    %v1189 = vpack.c.b16 %v833, %v829
    %v1190 = vpack.c.b16 %v838, %v834
    %v1191 = vpack.c.b16 %v839, %v835
    %v1192 = vpack.c.b16 %v840, %v836
    %v1193 = vpack.c.b16 %v841, %v837
    %v1194 = vpack.c.b16 %v846, %v842
    %v1195 = vpack.c.b16 %v847, %v843
    %v1196 = vpack.c.b16 %v848, %v844
    %v1197 = vpack.c.b16 %v849, %v845
    %v1198 = vpack.c.b16 %v854, %v850
    %v1199 = vpack.c.b16 %v855, %v851
    %v1200 = vpack.c.b16 %v856, %v852
    %v1201 = vpack.c.b16 %v857, %v853
    %v1202 = vpack.c.b16 %v862, %v858
    %v1203 = vpack.c.b16 %v863, %v859
    %v1204 = vpack.c.b16 %v864, %v860
    %v1205 = vpack.c.b16 %v865, %v861
    %v1206 = vpack.c.b16 %v870, %v866
    %v1207 = vpack.c.b16 %v871, %v867
    %v1208 = vpack.c.b16 %v872, %v868
    %v1209 = vpack.c.b16 %v873, %v869
    %v1210 = vpack.c.b16 %v878, %v874
    %v1211 = vpack.c.b16 %v879, %v875
    %v1212 = vpack.c.b16 %v880, %v876
    %v1213 = vpack.c.b16 %v881, %v877
    %v1214 = vpack.c.b16 %v886, %v882
    %v1215 = vpack.c.b16 %v887, %v883
    %v1216 = vpack.c.b16 %v888, %v884
    %v1217 = vpack.c.b16 %v889, %v885
    %v1218 = vpack.c.b16 %v894, %v890
    %v1219 = vpack.c.b16 %v895, %v891
    %v1220 = vpack.c.b16 %v896, %v892
    %v1221 = vpack.c.b16 %v897, %v893
    %v1222 = vpack.c.b16 %v902, %v898
    %v1223 = vpack.c.b16 %v903, %v899
    %v1224 = vpack.c.b16 %v904, %v900
    %v1225 = vpack.c.b16 %v905, %v901
    %v1226 = vpack.c.b16 %v910, %v906
    %v1227 = vpack.c.b16 %v911, %v907
    %v1228 = vpack.c.b16 %v912, %v908
    %v1229 = vpack.c.b16 %v913, %v909
    %v1230 = vpack.c.b16 %v918, %v914
    %v1231 = vpack.c.b16 %v919, %v915
    %v1232 = vpack.c.b16 %v920, %v916
    %v1233 = vpack.c.b16 %v921, %v917
    %v1234 = vpack.c.b16 %v926, %v922
    %v1235 = vpack.c.b16 %v927, %v923
    %v1236 = vpack.c.b16 %v928, %v924
    %v1237 = vpack.c.b16 %v929, %v925
    %v1238 = vpack.c.b16 %v934, %v930
    %v1239 = vpack.c.b16 %v935, %v931
    %v1240 = vpack.c.b16 %v936, %v932
    %v1241 = vpack.c.b16 %v937, %v933
    %v1242 = vpack.c.b16 %v942, %v938
    %v1243 = vpack.c.b16 %v943, %v939
    %v1244 = vpack.c.b16 %v944, %v940
    %v1245 = vpack.c.b16 %v945, %v941
    %v1246 = vpack.c.b16 %v950, %v946
    %v1247 = vpack.c.b16 %v951, %v947
    %v1248 = vpack.c.b16 %v952, %v948
    %v1249 = vpack.c.b16 %v953, %v949
    %v1250 = vpack.c.b16 %v958, %v954
    %v1251 = vpack.c.b16 %v959, %v955
    %v1252 = vpack.c.b16 %v960, %v956
    %v1253 = vpack.c.b16 %v961, %v957
    %v1254 = vpack.c.b16 %v966, %v962
    %v1255 = vpack.c.b16 %v967, %v963
    %v1256 = vpack.c.b16 %v968, %v964
    %v1257 = vpack.c.b16 %v969, %v965
    %v1258 = vpack.c.b16 %v974, %v970
    %v1259 = vpack.c.b16 %v975, %v971
    %v1260 = vpack.c.b16 %v976, %v972
    %v1261 = vpack.c.b16 %v977, %v973
    %v1262 = vpack.c.b16 %v982, %v978
    %v1263 = vpack.c.b16 %v983, %v979
    %v1264 = vpack.c.b16 %v984, %v980
    %v1265 = vpack.c.b16 %v985, %v981
    %v1266 = vpack.c.b16 %v990, %v986
    %v1267 = vpack.c.b16 %v991, %v987
    %v1268 = vpack.c.b16 %v992, %v988
    %v1269 = vpack.c.b16 %v993, %v989
    %v1270 = vpack.c.b16 %v998, %v994
    %v1271 = vpack.c.b16 %v999, %v995
    %v1272 = vpack.c.b16 %v1000, %v996
    %v1273 = vpack.c.b16 %v1001, %v997
    %v1274 = vpack.c.b16 %v1006, %v1002
    %v1275 = vpack.c.b16 %v1007, %v1003
    %v1276 = vpack.c.b16 %v1008, %v1004
    %v1277 = vpack.c.b16 %v1009, %v1005
    %v1278 = vpack.c.b16 %v1014, %v1010
    %v1279 = vpack.c.b16 %v1015, %v1011
    %v1280 = vpack.c.b16 %v1016, %v1012
    %v1281 = vpack.c.b16 %v1017, %v1013
    %v1282 = vpack.c.b16 %v1022, %v1018
    %v1283 = vpack.c.b16 %v1023, %v1019
    %v1284 = vpack.c.b16 %v1024, %v1020
    %v1285 = vpack.c.b16 %v1025, %v1021
    %v1286 = vpack.c.b16 %v1030, %v1026
    %v1287 = vpack.c.b16 %v1031, %v1027
    %v1288 = vpack.c.b16 %v1032, %v1028
    %v1289 = vpack.c.b16 %v1033, %v1029
    %v1290 = vpack.c.b16 %v1038, %v1034
    %v1291 = vpack.c.b16 %v1039, %v1035
    %v1292 = vpack.c.b16 %v1040, %v1036
    %v1293 = vpack.c.b16 %v1041, %v1037
    %v1294 = vpack.c.b16 %v1046, %v1042
    %v1295 = vpack.c.b16 %v1047, %v1043
    %v1296 = vpack.c.b16 %v1048, %v1044
    %v1297 = vpack.c.b16 %v1049, %v1045
    %v1298 = vpack.c.b16 %v1054, %v1050
    %v1299 = vpack.c.b16 %v1055, %v1051
    %v1300 = vpack.c.b16 %v1056, %v1052
    %v1301 = vpack.c.b16 %v1057, %v1053
    %v1302 = vpack.c.b16 %v1062, %v1058
    %v1303 = vpack.c.b16 %v1063, %v1059
    %v1304 = vpack.c.b16 %v1064, %v1060
    %v1305 = vpack.c.b16 %v1065, %v1061
    %v1306 = vpack.c.b16 %v1070, %v1066
    %v1307 = vpack.c.b16 %v1071, %v1067
    %v1308 = vpack.c.b16 %v1072, %v1068
    %v1309 = vpack.c.b16 %v1073, %v1069
    %v1310 = vpack.c.b16 %v1078, %v1074
    %v1311 = vpack.c.b16 %v1079, %v1075
    %v1312 = vpack.c.b16 %v1080, %v1076
    %v1313 = vpack.c.b16 %v1081, %v1077
    %v1314 = vpack.c.b16 %v1086, %v1082
    %v1315 = vpack.c.b16 %v1087, %v1083
    %v1316 = vpack.c.b16 %v1088, %v1084
    %v1317 = vpack.c.b16 %v1089, %v1085
    %v1318 = vpack.c.b16 %v1094, %v1090
    %v1319 = vpack.c.b16 %v1095, %v1091
    %v1320 = vpack.c.b16 %v1096, %v1092
    %v1321 = vpack.c.b16 %v1097, %v1093
    %v1322 = vpack.c.b16 %v1102, %v1098
    %v1323 = vpack.c.b16 %v1103, %v1099
    %v1324 = vpack.c.b16 %v1104, %v1100
    %v1325 = vpack.c.b16 %v1105, %v1101
    %v1326 = vpack.c.b16 %v1110, %v1106
    %v1327 = vpack.c.b16 %v1111, %v1107
    %v1328 = vpack.c.b16 %v1112, %v1108
    %v1329 = vpack.c.b16 %v1113, %v1109
    %v1330 = vpack.c.b16 %v1118, %v1114
    %v1331 = vpack.c.b16 %v1119, %v1115
    %v1332 = vpack.c.b16 %v1120, %v1116
    %v1333 = vpack.c.b16 %v1121, %v1117
    %v1334 = vpack.c.b16 %v1126, %v1122
    %v1335 = vpack.c.b16 %v1127, %v1123
    %v1336 = vpack.c.b16 %v1128, %v1124
    %v1337 = vpack.c.b16 %v1129, %v1125
    %v1338 = vpack.c.b16 %v1134, %v1130
    %v1339 = vpack.c.b16 %v1135, %v1131
    %v1340 = vpack.c.b16 %v1136, %v1132
    %v1341 = vpack.c.b16 %v1137, %v1133
    %v1342 = vpack.c.b16 %v1142, %v1138
    %v1343 = vpack.c.b16 %v1143, %v1139
    %v1344 = vpack.c.b16 %v1144, %v1140
    %v1345 = vpack.c.b16 %v1145, %v1141
    %v1346 = vpack.c.b16 %v1150, %v1146
    %v1347 = vpack.c.b16 %v1151, %v1147
    %v1348 = vpack.c.b16 %v1152, %v1148
    %v1349 = vpack.c.b16 %v1153, %v1149
    %v1350 = vpack.c.b16 %v1158, %v1154
    %v1351 = vpack.c.b16 %v1159, %v1155
    %v1352 = vpack.c.b16 %v1160, %v1156
    %v1353 = vpack.c.b16 %v1161, %v1157
    %1546 = vmatprep.subr.bf16.mxu0 %v1163
    %1547 = vmatpush1.bf16.msra.mxu0 %v1162
    %1548 = vmatprep.subr.bf16.mxu0 %v1167
    %1549 = vmatpush1.bf16.msra.mxu0 %v1166
    %1550 = vmatprep.subr.bf16.mxu0 %v1171
    %1551 = vmatpush1.bf16.msra.mxu0 %v1170
    %1552 = vmatprep.subr.bf16.mxu0 %v1175
    %1553 = vmatpush1.bf16.msra.mxu0 %v1174
    %1554 = vmatprep.subr.bf16.mxu0 %v1179
    %1555 = vmatpush1.bf16.msra.mxu0 %v1178
    %1556 = vmatprep.subr.bf16.mxu0 %v1183
    %1557 = vmatpush1.bf16.msra.mxu0 %v1182
    %1558 = vmatprep.subr.bf16.mxu0 %v1187
    %1559 = vmatpush1.bf16.msra.mxu0 %v1186
    %1560 = vmatprep.subr.bf16.mxu0 %v1191
    %1561 = vmatpush1.bf16.msra.mxu0 %v1190
    %1562 = vmatprep.subr.bf16.mxu0 %v1195
    %1563 = vmatpush1.bf16.msra.mxu0 %v1194
    %1564 = vmatprep.subr.bf16.mxu0 %v1199
    %1565 = vmatpush1.bf16.msra.mxu0 %v1198
    %1566 = vmatprep.subr.bf16.mxu0 %v1203
    %1567 = vmatpush1.bf16.msra.mxu0 %v1202
    %1568 = vmatprep.subr.bf16.mxu0 %v1207
    %1569 = vmatpush1.bf16.msra.mxu0 %v1206
    %1570 = vmatprep.subr.bf16.mxu0 %v1211
    %1571 = vmatpush1.bf16.msra.mxu0 %v1210
    %1572 = vmatprep.subr.bf16.mxu0 %v1215
    %1573 = vmatpush1.bf16.msra.mxu0 %v1214
    %1574 = vmatprep.subr.bf16.mxu0 %v1219
    %1575 = vmatpush1.bf16.msra.mxu0 %v1218
    %1576 = vmatprep.subr.bf16.mxu0 %v1223
    %1577 = vmatpush1.bf16.msra.mxu0 %v1222
    %1578 = vmatprep.mubr.bf16.mxu0 %v367
    %1579 = vmatmul.mubr.bf16.gmra.mrb[0].mxu0 %v366
    %v1580 = vpop.f32.mrb[0].mxu0
    %v1581 = vadd.f32 %v569, %v1580
    %v1582 = vpop.f32.mrb[0].mxu0
    %v1583 = vadd.f32 %v573, %v1582
    %v1584 = vpop.f32.mrb[0].mxu0
    %v1585 = vpop.f32.mrb[0].mxu0
    %1586 = vdwg.mxu0
    %1587 = vmatprep.subr.bf16.mxu0 %v1227
    %1588 = vmatpush1.bf16.msra.mxu0 %v1226
    %1589 = vmatprep.subr.bf16.mxu0 %v1231
    %1590 = vmatpush1.bf16.msra.mxu0 %v1230
    %1591 = vmatprep.subr.bf16.mxu0 %v1235
    %1592 = vmatpush1.bf16.msra.mxu0 %v1234
    %1593 = vmatprep.subr.bf16.mxu0 %v1239
    %1594 = vmatpush1.bf16.msra.mxu0 %v1238
    %1595 = vmatprep.subr.bf16.mxu0 %v1243
    %1596 = vmatpush1.bf16.msra.mxu0 %v1242
    %1597 = vmatprep.subr.bf16.mxu0 %v1247
    %1598 = vmatpush1.bf16.msra.mxu0 %v1246
    %1599 = vmatprep.subr.bf16.mxu0 %v1251
    %1600 = vmatpush1.bf16.msra.mxu0 %v1250
    %1601 = vmatprep.subr.bf16.mxu0 %v1255
    %1602 = vmatpush1.bf16.msra.mxu0 %v1254
    %1603 = vmatprep.subr.bf16.mxu0 %v1259
    %1604 = vmatpush1.bf16.msra.mxu0 %v1258
    %1605 = vmatprep.subr.bf16.mxu0 %v1263
    %1606 = vmatpush1.bf16.msra.mxu0 %v1262
    %1607 = vmatprep.subr.bf16.mxu0 %v1267
    %1608 = vmatpush1.bf16.msra.mxu0 %v1266
    %1609 = vmatprep.subr.bf16.mxu0 %v1271
    %1610 = vmatpush1.bf16.msra.mxu0 %v1270
    %1611 = vmatprep.subr.bf16.mxu0 %v1275
    %1612 = vmatpush1.bf16.msra.mxu0 %v1274
    %1613 = vmatprep.subr.bf16.mxu0 %v1279
    %1614 = vmatpush1.bf16.msra.mxu0 %v1278
    %1615 = vmatprep.subr.bf16.mxu0 %v1283
    %1616 = vmatpush1.bf16.msra.mxu0 %v1282
    %1617 = vmatprep.subr.bf16.mxu0 %v1287
    %1618 = vmatpush1.bf16.msra.mxu0 %v1286
    %1619 = vmatprep.mubr.bf16.mxu0 %v369
    %1620 = vmatmul.mubr.bf16.gmra.mrb[0].mxu0 %v368
    %v1621 = vpop.f32.mrb[0].mxu0
    %v1622 = vadd.f32 %v1581, %v1621
    %v1623 = vpop.f32.mrb[0].mxu0
    %v1624 = vadd.f32 %v1583, %v1623
    %v1625 = vpop.f32.mrb[0].mxu0
    %v1626 = vpop.f32.mrb[0].mxu0
    %1627 = vdwg.mxu0
    %1628 = vmatprep.subr.bf16.mxu0 %v1291
    %1629 = vmatpush1.bf16.msra.mxu0 %v1290
    %1630 = vmatprep.subr.bf16.mxu0 %v1295
    %1631 = vmatpush1.bf16.msra.mxu0 %v1294
    %1632 = vmatprep.subr.bf16.mxu0 %v1299
    %1633 = vmatpush1.bf16.msra.mxu0 %v1298
    %1634 = vmatprep.subr.bf16.mxu0 %v1303
    %1635 = vmatpush1.bf16.msra.mxu0 %v1302
    %1636 = vmatprep.subr.bf16.mxu0 %v1307
    %1637 = vmatpush1.bf16.msra.mxu0 %v1306
    %1638 = vmatprep.subr.bf16.mxu0 %v1311
    %1639 = vmatpush1.bf16.msra.mxu0 %v1310
    %1640 = vmatprep.subr.bf16.mxu0 %v1315
    %1641 = vmatpush1.bf16.msra.mxu0 %v1314
    %1642 = vmatprep.subr.bf16.mxu0 %v1319
    %1643 = vmatpush1.bf16.msra.mxu0 %v1318
    %1644 = vmatprep.subr.bf16.mxu0 %v1323
    %1645 = vmatpush1.bf16.msra.mxu0 %v1322
    %1646 = vmatprep.subr.bf16.mxu0 %v1327
    %1647 = vmatpush1.bf16.msra.mxu0 %v1326
    %1648 = vmatprep.subr.bf16.mxu0 %v1331
    %1649 = vmatpush1.bf16.msra.mxu0 %v1330
    %1650 = vmatprep.subr.bf16.mxu0 %v1335
    %1651 = vmatpush1.bf16.msra.mxu0 %v1334
    %1652 = vmatprep.subr.bf16.mxu0 %v1339
    %1653 = vmatpush1.bf16.msra.mxu0 %v1338
    %1654 = vmatprep.subr.bf16.mxu0 %v1343
    %1655 = vmatpush1.bf16.msra.mxu0 %v1342
    %1656 = vmatprep.subr.bf16.mxu0 %v1347
    %1657 = vmatpush1.bf16.msra.mxu0 %v1346
    %1658 = vmatprep.subr.bf16.mxu0 %v1351
    %1659 = vmatpush1.bf16.msra.mxu0 %v1350
    %1660 = vmatprep.mubr.bf16.mxu0 %v371
    %1661 = vmatmul.mubr.bf16.gmra.mrb[0].mxu0 %v370
    %v1662 = vpop.f32.mrb[0].mxu0
    %v1663 = vadd.f32 %v1622, %v1662
    %v1664 = vpop.f32.mrb[0].mxu0
    %v1665 = vadd.f32 %v1624, %v1664
    %v1666 = vpop.f32.mrb[0].mxu0
    %v1667 = vpop.f32.mrb[0].mxu0
    %1668 = vdwg.mxu0
    %1669 = vmatprep.subr.bf16.mxu0 %v1165
    %1670 = vmatpush1.bf16.msra.mxu0 %v1164
    %1671 = vmatprep.subr.bf16.mxu0 %v1169
    %1672 = vmatpush1.bf16.msra.mxu0 %v1168
    %1673 = vmatprep.subr.bf16.mxu0 %v1173
    %1674 = vmatpush1.bf16.msra.mxu0 %v1172
    %1675 = vmatprep.subr.bf16.mxu0 %v1177
    %1676 = vmatpush1.bf16.msra.mxu0 %v1176
    %1677 = vmatprep.subr.bf16.mxu0 %v1181
    %1678 = vmatpush1.bf16.msra.mxu0 %v1180
    %1679 = vmatprep.subr.bf16.mxu0 %v1185
    %1680 = vmatpush1.bf16.msra.mxu0 %v1184
    %1681 = vmatprep.subr.bf16.mxu0 %v1189
    %1682 = vmatpush1.bf16.msra.mxu0 %v1188
    %1683 = vmatprep.subr.bf16.mxu0 %v1193
    %1684 = vmatpush1.bf16.msra.mxu0 %v1192
    %1685 = vmatprep.subr.bf16.mxu0 %v1197
    %1686 = vmatpush1.bf16.msra.mxu0 %v1196
    %1687 = vmatprep.subr.bf16.mxu0 %v1201
    %1688 = vmatpush1.bf16.msra.mxu0 %v1200
    %1689 = vmatprep.subr.bf16.mxu0 %v1205
    %1690 = vmatpush1.bf16.msra.mxu0 %v1204
    %1691 = vmatprep.subr.bf16.mxu0 %v1209
    %1692 = vmatpush1.bf16.msra.mxu0 %v1208
    %1693 = vmatprep.subr.bf16.mxu0 %v1213
    %1694 = vmatpush1.bf16.msra.mxu0 %v1212
    %1695 = vmatprep.subr.bf16.mxu0 %v1217
    %1696 = vmatpush1.bf16.msra.mxu0 %v1216
    %1697 = vmatprep.subr.bf16.mxu0 %v1221
    %1698 = vmatpush1.bf16.msra.mxu0 %v1220
    %1699 = vmatprep.subr.bf16.mxu0 %v1225
    %1700 = vmatpush1.bf16.msra.mxu0 %v1224
    %1701 = vmatprep.mubr.bf16.mxu0 %v367
    %1702 = vmatmul.mubr.bf16.gmra.mrb[0].mxu0 %v366
    %v1703 = vpop.f32.mrb[0].mxu0
    %v1704 = vadd.f32 %v577, %v1703
    %v1705 = vpop.f32.mrb[0].mxu0
    %v1706 = vadd.f32 %v581, %v1705
    %v1707 = vpop.f32.mrb[0].mxu0
    %v1708 = vpop.f32.mrb[0].mxu0
    %1709 = vdwg.mxu0
    %1710 = vmatprep.subr.bf16.mxu0 %v1229
    %1711 = vmatpush1.bf16.msra.mxu0 %v1228
    %1712 = vmatprep.subr.bf16.mxu0 %v1233
    %1713 = vmatpush1.bf16.msra.mxu0 %v1232
    %1714 = vmatprep.subr.bf16.mxu0 %v1237
    %1715 = vmatpush1.bf16.msra.mxu0 %v1236
    %1716 = vmatprep.subr.bf16.mxu0 %v1241
    %1717 = vmatpush1.bf16.msra.mxu0 %v1240
    %1718 = vmatprep.subr.bf16.mxu0 %v1245
    %1719 = vmatpush1.bf16.msra.mxu0 %v1244
    %1720 = vmatprep.subr.bf16.mxu0 %v1249
    %1721 = vmatpush1.bf16.msra.mxu0 %v1248
    %1722 = vmatprep.subr.bf16.mxu0 %v1253
    %1723 = vmatpush1.bf16.msra.mxu0 %v1252
    %1724 = vmatprep.subr.bf16.mxu0 %v1257
    %1725 = vmatpush1.bf16.msra.mxu0 %v1256
    %1726 = vmatprep.subr.bf16.mxu0 %v1261
    %1727 = vmatpush1.bf16.msra.mxu0 %v1260
    %1728 = vmatprep.subr.bf16.mxu0 %v1265
    %1729 = vmatpush1.bf16.msra.mxu0 %v1264
    %1730 = vmatprep.subr.bf16.mxu0 %v1269
    %1731 = vmatpush1.bf16.msra.mxu0 %v1268
    %1732 = vmatprep.subr.bf16.mxu0 %v1273
    %1733 = vmatpush1.bf16.msra.mxu0 %v1272
    %1734 = vmatprep.subr.bf16.mxu0 %v1277
    %1735 = vmatpush1.bf16.msra.mxu0 %v1276
    %1736 = vmatprep.subr.bf16.mxu0 %v1281
    %1737 = vmatpush1.bf16.msra.mxu0 %v1280
    %1738 = vmatprep.subr.bf16.mxu0 %v1285
    %1739 = vmatpush1.bf16.msra.mxu0 %v1284
    %1740 = vmatprep.subr.bf16.mxu0 %v1289
    %1741 = vmatpush1.bf16.msra.mxu0 %v1288
    %1742 = vmatprep.mubr.bf16.mxu0 %v369
    %1743 = vmatmul.mubr.bf16.gmra.mrb[0].mxu0 %v368
    %v1744 = vpop.f32.mrb[0].mxu0
    %v1745 = vadd.f32 %v1704, %v1744
    %v1746 = vpop.f32.mrb[0].mxu0
    %v1747 = vadd.f32 %v1706, %v1746
    %v1748 = vpop.f32.mrb[0].mxu0
    %v1749 = vpop.f32.mrb[0].mxu0
    %1750 = vdwg.mxu0
    %1751 = vmatprep.subr.bf16.mxu0 %v1293
    %1752 = vmatpush1.bf16.msra.mxu0 %v1292
    %1753 = vmatprep.subr.bf16.mxu0 %v1297
    %1754 = vmatpush1.bf16.msra.mxu0 %v1296
    %1755 = vmatprep.subr.bf16.mxu0 %v1301
    %1756 = vmatpush1.bf16.msra.mxu0 %v1300
    %1757 = vmatprep.subr.bf16.mxu0 %v1305
    %1758 = vmatpush1.bf16.msra.mxu0 %v1304
    %1759 = vmatprep.subr.bf16.mxu0 %v1309
    %1760 = vmatpush1.bf16.msra.mxu0 %v1308
    %1761 = vmatprep.subr.bf16.mxu0 %v1313
    %1762 = vmatpush1.bf16.msra.mxu0 %v1312
    %1763 = vmatprep.subr.bf16.mxu0 %v1317
    %1764 = vmatpush1.bf16.msra.mxu0 %v1316
    %1765 = vmatprep.subr.bf16.mxu0 %v1321
    %1766 = vmatpush1.bf16.msra.mxu0 %v1320
    %1767 = vmatprep.subr.bf16.mxu0 %v1325
    %1768 = vmatpush1.bf16.msra.mxu0 %v1324
    %1769 = vmatprep.subr.bf16.mxu0 %v1329
    %1770 = vmatpush1.bf16.msra.mxu0 %v1328
    %1771 = vmatprep.subr.bf16.mxu0 %v1333
    %1772 = vmatpush1.bf16.msra.mxu0 %v1332
    %1773 = vmatprep.subr.bf16.mxu0 %v1337
    %1774 = vmatpush1.bf16.msra.mxu0 %v1336
    %1775 = vmatprep.subr.bf16.mxu0 %v1341
    %1776 = vmatpush1.bf16.msra.mxu0 %v1340
    %1777 = vmatprep.subr.bf16.mxu0 %v1345
    %1778 = vmatpush1.bf16.msra.mxu0 %v1344
    %1779 = vmatprep.subr.bf16.mxu0 %v1349
    %1780 = vmatpush1.bf16.msra.mxu0 %v1348
    %1781 = vmatprep.subr.bf16.mxu0 %v1353
    %1782 = vmatpush1.bf16.msra.mxu0 %v1352
    %1783 = vmatprep.mubr.bf16.mxu0 %v371
    %1784 = vmatmul.mubr.bf16.gmra.mrb[0].mxu0 %v370
    %v1785 = vpop.f32.mrb[0].mxu0
    %v1786 = vadd.f32 %v1745, %v1785
    %v1787 = vpop.f32.mrb[0].mxu0
    %v1788 = vadd.f32 %v1747, %v1787
    %v1789 = vpop.f32.mrb[0].mxu0
    %v1790 = vpop.f32.mrb[0].mxu0
    %1791 = vdwg.mxu0
    %v1792 = vmax.f32 %v1663, 0.0
    %v1793 = vmax.f32 %v1665, 0.0
    %v1794 = vmax.f32 %v1786, 0.0
    %v1795 = vmax.f32 %v1788, 0.0
    %v1796 = vpack.c.bf16 %v1792, %v1792
    %v1797 = vpack.c.bf16 %v1793, %v1793
    %v1798 = vpack.c.bf16 %v1794, %v1794
    %v1799 = vpack.c.bf16 %v1795, %v1795
    %v1800 = vld [vmem:[#allocation6] sm:$0xff]
    %v1801 = vld [vmem:[#allocation6 + $0x8] sm:$0xf]
    %v1802 = vld [vmem:[#allocation6 + $0xc] sm:$0xff]
    %v1803 = vld [vmem:[#allocation6 + $0x14] sm:$0xf]
    %v1804 = vld [vmem:[#allocation6 + $0x18] sm:$0xff]
    %v1805 = vld [vmem:[#allocation6 + $0x20] sm:$0xf]
    %v1806 = vld [vmem:[#allocation6 + $0x24] sm:$0xff]
    %v1807 = vld [vmem:[#allocation6 + $0x2c] sm:$0xf]
    %v1808 = vld [vmem:[#allocation6 + $0x30] sm:$0xff]
    %v1809 = vld [vmem:[#allocation6 + $0x38] sm:$0xf]
    %v1810 = vld [vmem:[#allocation6 + $0x3c] sm:$0xff]
    %v1811 = vld [vmem:[#allocation6 + $0x44] sm:$0xf]
    %v1812 = vld [vmem:[#allocation6 + $0x48] sm:$0xff]
    %v1813 = vld [vmem:[#allocation6 + $0x50] sm:$0xf]
    %v1814 = vld [vmem:[#allocation6 + $0x54] sm:$0xff]
    %v1815 = vld [vmem:[#allocation6 + $0x5c] sm:$0xf]
    %v1816 = vld [vmem:[#allocation6 + $0x60] sm:$0xff]
    %v1817 = vld [vmem:[#allocation6 + $0x68] sm:$0xf]
    %v1818 = vld [vmem:[#allocation6 + $0x6c] sm:$0xff]
    %v1819 = vld [vmem:[#allocation6 + $0x74] sm:$0xf]
    %v1820 = vld [vmem:[#allocation6 + $0x78] sm:$0xff]
    %v1821 = vld [vmem:[#allocation6 + $0x80] sm:$0xf]
    %v1822 = vld [vmem:[#allocation6 + $0x84] sm:$0xff]
    %v1823 = vld [vmem:[#allocation6 + $0x8c] sm:$0xf]
    %v1824 = vld [vmem:[#allocation6 + $0x90] sm:$0xff]
    %v1825 = vld [vmem:[#allocation6 + $0x98] sm:$0xf]
    %v1826 = vld [vmem:[#allocation6 + $0x9c] sm:$0xff]
    %v1827 = vld [vmem:[#allocation6 + $0xa4] sm:$0xf]
    %v1828 = vld [vmem:[#allocation6 + $0xa8] sm:$0xff]
    %v1829 = vld [vmem:[#allocation6 + $0xb0] sm:$0xf]
    %v1830 = vld [vmem:[#allocation6 + $0xb4] sm:$0xff]
    %v1831 = vld [vmem:[#allocation6 + $0xbc] sm:$0xf]
    %v1832 = vld [vmem:[#allocation6 + $0xc0] sm:$0xff]
    %v1833 = vld [vmem:[#allocation6 + $0xc8] sm:$0xf]
    %v1834 = vld [vmem:[#allocation6 + $0xcc] sm:$0xff]
    %v1835 = vld [vmem:[#allocation6 + $0xd4] sm:$0xf]
    %v1836 = vld [vmem:[#allocation6 + $0xd8] sm:$0xff]
    %v1837 = vld [vmem:[#allocation6 + $0xe0] sm:$0xf]
    %v1838 = vld [vmem:[#allocation6 + $0xe4] sm:$0xff]
    %v1839 = vld [vmem:[#allocation6 + $0xec] sm:$0xf]
    %v1840 = vld [vmem:[#allocation6 + $0xf0] sm:$0xff]
    %v1841 = vld [vmem:[#allocation6 + $0xf8] sm:$0xf]
    %v1842 = vld [vmem:[#allocation6 + $0xfc] sm:$0xff]
    %v1843 = vld [vmem:[#allocation6 + $0x104] sm:$0xf]
    %v1844 = vld [vmem:[#allocation6 + $0x108] sm:$0xff]
    %v1845 = vld [vmem:[#allocation6 + $0x110] sm:$0xf]
    %v1846 = vld [vmem:[#allocation6 + $0x114] sm:$0xff]
    %v1847 = vld [vmem:[#allocation6 + $0x11c] sm:$0xf]
    %v1848 = vld [vmem:[#allocation6 + $0x120] sm:$0xff]
    %v1849 = vld [vmem:[#allocation6 + $0x128] sm:$0xf]
    %v1850 = vld [vmem:[#allocation6 + $0x12c] sm:$0xff]
    %v1851 = vld [vmem:[#allocation6 + $0x134] sm:$0xf]
    %v1852 = vld [vmem:[#allocation6 + $0x138] sm:$0xff]
    %v1853 = vld [vmem:[#allocation6 + $0x140] sm:$0xf]
    %v1854 = vld [vmem:[#allocation6 + $0x144] sm:$0xff]
    %v1855 = vld [vmem:[#allocation6 + $0x14c] sm:$0xf]
    %v1856 = vld [vmem:[#allocation6 + $0x150] sm:$0xff]
    %v1857 = vld [vmem:[#allocation6 + $0x158] sm:$0xf]
    %v1858 = vld [vmem:[#allocation6 + $0x15c] sm:$0xff]
    %v1859 = vld [vmem:[#allocation6 + $0x164] sm:$0xf]
    %v1860 = vld [vmem:[#allocation6 + $0x168] sm:$0xff]
    %v1861 = vld [vmem:[#allocation6 + $0x170] sm:$0xf]
    %v1862 = vld [vmem:[#allocation6 + $0x174] sm:$0xff]
    %v1863 = vld [vmem:[#allocation6 + $0x17c] sm:$0xf]
    %v1864 = vld [vmem:[#allocation6 + $0x180] sm:$0xff]
    %v1865 = vld [vmem:[#allocation6 + $0x188] sm:$0xf]
    %v1866 = vld [vmem:[#allocation6 + $0x18c] sm:$0xff]
    %v1867 = vld [vmem:[#allocation6 + $0x194] sm:$0xf]
    %v1868 = vld [vmem:[#allocation6 + $0x198] sm:$0xff]
    %v1869 = vld [vmem:[#allocation6 + $0x1a0] sm:$0xf]
    %v1870 = vld [vmem:[#allocation6 + $0x1a4] sm:$0xff]
    %v1871 = vld [vmem:[#allocation6 + $0x1ac] sm:$0xf]
    %v1872 = vld [vmem:[#allocation6 + $0x1b0] sm:$0xff]
    %v1873 = vld [vmem:[#allocation6 + $0x1b8] sm:$0xf]
    %v1874 = vld [vmem:[#allocation6 + $0x1bc] sm:$0xff]
    %v1875 = vld [vmem:[#allocation6 + $0x1c4] sm:$0xf]
    %v1876 = vld [vmem:[#allocation6 + $0x1c8] sm:$0xff]
    %v1877 = vld [vmem:[#allocation6 + $0x1d0] sm:$0xf]
    %v1878 = vld [vmem:[#allocation6 + $0x1d4] sm:$0xff]
    %v1879 = vld [vmem:[#allocation6 + $0x1dc] sm:$0xf]
    %v1880 = vld [vmem:[#allocation6 + $0x1e0] sm:$0xff]
    %v1881 = vld [vmem:[#allocation6 + $0x1e8] sm:$0xf]
    %v1882 = vld [vmem:[#allocation6 + $0x1ec] sm:$0xff]
    %v1883 = vld [vmem:[#allocation6 + $0x1f4] sm:$0xf]
    %v1884 = vld [vmem:[#allocation6 + $0x1f8] sm:$0xff]
    %v1885 = vld [vmem:[#allocation6 + $0x200] sm:$0xf]
    %v1886 = vld [vmem:[#allocation6 + $0x204] sm:$0xff]
    %v1887 = vld [vmem:[#allocation6 + $0x20c] sm:$0xf]
    %v1888 = vld [vmem:[#allocation6 + $0x210] sm:$0xff]
    %v1889 = vld [vmem:[#allocation6 + $0x218] sm:$0xf]
    %v1890 = vld [vmem:[#allocation6 + $0x21c] sm:$0xff]
    %v1891 = vld [vmem:[#allocation6 + $0x224] sm:$0xf]
    %v1892 = vld [vmem:[#allocation6 + $0x228] sm:$0xff]
    %v1893 = vld [vmem:[#allocation6 + $0x230] sm:$0xf]
    %v1894 = vld [vmem:[#allocation6 + $0x234] sm:$0xff]
    %v1895 = vld [vmem:[#allocation6 + $0x23c] sm:$0xf]
    %v1896 = vld [vmem:[#allocation6 + $0x240] sm:$0xff]
    %v1897 = vld [vmem:[#allocation6 + $0x248] sm:$0xf]
    %v1898 = vld [vmem:[#allocation6 + $0x24c] sm:$0xff]
    %v1899 = vld [vmem:[#allocation6 + $0x254] sm:$0xf]
    %v1900 = vld [vmem:[#allocation6 + $0x258] sm:$0xff]
    %v1901 = vld [vmem:[#allocation6 + $0x260] sm:$0xf]
    %v1902 = vld [vmem:[#allocation6 + $0x264] sm:$0xff]
    %v1903 = vld [vmem:[#allocation6 + $0x26c] sm:$0xf]
    %v1904 = vld [vmem:[#allocation6 + $0x270] sm:$0xff]
    %v1905 = vld [vmem:[#allocation6 + $0x278] sm:$0xf]
    %v1906 = vld [vmem:[#allocation6 + $0x27c] sm:$0xff]
    %v1907 = vld [vmem:[#allocation6 + $0x284] sm:$0xf]
    %v1908 = vld [vmem:[#allocation6 + $0x288] sm:$0xff]
    %v1909 = vld [vmem:[#allocation6 + $0x290] sm:$0xf]
    %v1910 = vld [vmem:[#allocation6 + $0x294] sm:$0xff]
    %v1911 = vld [vmem:[#allocation6 + $0x29c] sm:$0xf]
    %v1912 = vld [vmem:[#allocation6 + $0x2a0] sm:$0xff]
    %v1913 = vld [vmem:[#allocation6 + $0x2a8] sm:$0xf]
    %v1914 = vld [vmem:[#allocation6 + $0x2ac] sm:$0xff]
    %v1915 = vld [vmem:[#allocation6 + $0x2b4] sm:$0xf]
    %v1916 = vld [vmem:[#allocation6 + $0x2b8] sm:$0xff]
    %v1917 = vld [vmem:[#allocation6 + $0x2c0] sm:$0xf]
    %v1918 = vld [vmem:[#allocation6 + $0x2c4] sm:$0xff]
    %v1919 = vld [vmem:[#allocation6 + $0x2cc] sm:$0xf]
    %v1920 = vld [vmem:[#allocation6 + $0x2d0] sm:$0xff]
    %v1921 = vld [vmem:[#allocation6 + $0x2d8] sm:$0xf]
    %v1922 = vld [vmem:[#allocation6 + $0x2dc] sm:$0xff]
    %v1923 = vld [vmem:[#allocation6 + $0x2e4] sm:$0xf]
    %v1924 = vld [vmem:[#allocation6 + $0x2e8] sm:$0xff]
    %v1925 = vld [vmem:[#allocation6 + $0x2f0] sm:$0xf]
    %v1926 = vld [vmem:[#allocation6 + $0x2f4] sm:$0xff]
    %v1927 = vld [vmem:[#allocation6 + $0x2fc] sm:$0xf]
    %v1928 = vld [vmem:[%s6] sm:$0x7]
    %v1930 = vlaneseq
    %v1931 = vshrl.u32 %v1930, 7
    %v1932 = vsub.s32 0, %v1931
    %v1933 = vrot.slane %v1928, %v1932
    %v1934 = vlaneseq
    %v1935 = vshrl.u32 %v1934, 7
    %v1936 = vsub.s32 1, %v1935
    %v1937 = vrot.slane %v1928, %v1936
    %v1938 = vlaneseq
    %v1939 = vshrl.u32 %v1938, 7
    %v1940 = vsub.s32 2, %v1939
    %v1941 = vrot.slane %v1928, %v1940
    %v2073 = vunpack.c.l.b16 %v1800
    %v2074 = vunpack.c.h.b16 %v1800
    %v2075 = vunpack.c.l.b16 %v1801
    %v2076 = vunpack.c.l.b16 %v1802
    %v2077 = vunpack.c.h.b16 %v1802
    %v2078 = vunpack.c.l.b16 %v1803
    %v2079 = vunpack.c.l.b16 %v1804
    %v2080 = vunpack.c.h.b16 %v1804
    %v2081 = vunpack.c.l.b16 %v1805
    %v2082 = vunpack.c.l.b16 %v1806
    %v2083 = vunpack.c.h.b16 %v1806
    %v2084 = vunpack.c.l.b16 %v1807
    %v2085 = vunpack.c.l.b16 %v1808
    %v2086 = vunpack.c.h.b16 %v1808
    %v2087 = vunpack.c.l.b16 %v1809
    %v2088 = vunpack.c.l.b16 %v1810
    %v2089 = vunpack.c.h.b16 %v1810
    %v2090 = vunpack.c.l.b16 %v1811
    %v2091 = vunpack.c.l.b16 %v1812
    %v2092 = vunpack.c.h.b16 %v1812
    %v2093 = vunpack.c.l.b16 %v1813
    %v2094 = vunpack.c.l.b16 %v1814
    %v2095 = vunpack.c.h.b16 %v1814
    %v2096 = vunpack.c.l.b16 %v1815
    %v2097 = vunpack.c.l.b16 %v1816
    %v2098 = vunpack.c.h.b16 %v1816
    %v2099 = vunpack.c.l.b16 %v1817
    %v2100 = vunpack.c.l.b16 %v1818
    %v2101 = vunpack.c.h.b16 %v1818
    %v2102 = vunpack.c.l.b16 %v1819
    %v2103 = vunpack.c.l.b16 %v1820
    %v2104 = vunpack.c.h.b16 %v1820
    %v2105 = vunpack.c.l.b16 %v1821
    %v2106 = vunpack.c.l.b16 %v1822
    %v2107 = vunpack.c.h.b16 %v1822
    %v2108 = vunpack.c.l.b16 %v1823
    %v2109 = vunpack.c.l.b16 %v1824
    %v2110 = vunpack.c.h.b16 %v1824
    %v2111 = vunpack.c.l.b16 %v1825
    %v2112 = vunpack.c.l.b16 %v1826
    %v2113 = vunpack.c.h.b16 %v1826
    %v2114 = vunpack.c.l.b16 %v1827
    %v2115 = vunpack.c.l.b16 %v1828
    %v2116 = vunpack.c.h.b16 %v1828
    %v2117 = vunpack.c.l.b16 %v1829
    %v2118 = vunpack.c.l.b16 %v1830
    %v2119 = vunpack.c.h.b16 %v1830
    %v2120 = vunpack.c.l.b16 %v1831
    %v2121 = vunpack.c.l.b16 %v1832
    %v2122 = vunpack.c.h.b16 %v1832
    %v2123 = vunpack.c.l.b16 %v1833
    %v2124 = vunpack.c.l.b16 %v1834
    %v2125 = vunpack.c.h.b16 %v1834
    %v2126 = vunpack.c.l.b16 %v1835
    %v2127 = vunpack.c.l.b16 %v1836
    %v2128 = vunpack.c.h.b16 %v1836
    %v2129 = vunpack.c.l.b16 %v1837
    %v2130 = vunpack.c.l.b16 %v1838
    %v2131 = vunpack.c.h.b16 %v1838
    %v2132 = vunpack.c.l.b16 %v1839
    %v2133 = vunpack.c.l.b16 %v1840
    %v2134 = vunpack.c.h.b16 %v1840
    %v2135 = vunpack.c.l.b16 %v1841
    %v2136 = vunpack.c.l.b16 %v1842
    %v2137 = vunpack.c.h.b16 %v1842
    %v2138 = vunpack.c.l.b16 %v1843
    %v2139 = vunpack.c.l.b16 %v1844
    %v2140 = vunpack.c.h.b16 %v1844
    %v2141 = vunpack.c.l.b16 %v1845
    %v2142 = vunpack.c.l.b16 %v1846
    %v2143 = vunpack.c.h.b16 %v1846
    %v2144 = vunpack.c.l.b16 %v1847
    %v2145 = vunpack.c.l.b16 %v1848
    %v2146 = vunpack.c.h.b16 %v1848
    %v2147 = vunpack.c.l.b16 %v1849
    %v2148 = vunpack.c.l.b16 %v1850
    %v2149 = vunpack.c.h.b16 %v1850
    %v2150 = vunpack.c.l.b16 %v1851
    %v2151 = vunpack.c.l.b16 %v1852
    %v2152 = vunpack.c.h.b16 %v1852
    %v2153 = vunpack.c.l.b16 %v1853
    %v2154 = vunpack.c.l.b16 %v1854
    %v2155 = vunpack.c.h.b16 %v1854
    %v2156 = vunpack.c.l.b16 %v1855
    %v2157 = vunpack.c.l.b16 %v1856
    %v2158 = vunpack.c.h.b16 %v1856
    %v2159 = vunpack.c.l.b16 %v1857
    %v2160 = vunpack.c.l.b16 %v1858
    %v2161 = vunpack.c.h.b16 %v1858
    %v2162 = vunpack.c.l.b16 %v1859
    %v2163 = vunpack.c.l.b16 %v1860
    %v2164 = vunpack.c.h.b16 %v1860
    %v2165 = vunpack.c.l.b16 %v1861
    %v2166 = vunpack.c.l.b16 %v1862
    %v2167 = vunpack.c.h.b16 %v1862
    %v2168 = vunpack.c.l.b16 %v1863
    %v2169 = vunpack.c.l.b16 %v1864
    %v2170 = vunpack.c.h.b16 %v1864
    %v2171 = vunpack.c.l.b16 %v1865
    %v2172 = vunpack.c.l.b16 %v1866
    %v2173 = vunpack.c.h.b16 %v1866
    %v2174 = vunpack.c.l.b16 %v1867
    %v2175 = vunpack.c.l.b16 %v1868
    %v2176 = vunpack.c.h.b16 %v1868
    %v2177 = vunpack.c.l.b16 %v1869
    %v2178 = vunpack.c.l.b16 %v1870
    %v2179 = vunpack.c.h.b16 %v1870
    %v2180 = vunpack.c.l.b16 %v1871
    %v2181 = vunpack.c.l.b16 %v1872
    %v2182 = vunpack.c.h.b16 %v1872
    %v2183 = vunpack.c.l.b16 %v1873
    %v2184 = vunpack.c.l.b16 %v1874
    %v2185 = vunpack.c.h.b16 %v1874
    %v2186 = vunpack.c.l.b16 %v1875
    %v2187 = vunpack.c.l.b16 %v1876
    %v2188 = vunpack.c.h.b16 %v1876
    %v2189 = vunpack.c.l.b16 %v1877
    %v2190 = vunpack.c.l.b16 %v1878
    %v2191 = vunpack.c.h.b16 %v1878
    %v2192 = vunpack.c.l.b16 %v1879
    %v2193 = vunpack.c.l.b16 %v1880
    %v2194 = vunpack.c.h.b16 %v1880
    %v2195 = vunpack.c.l.b16 %v1881
    %v2196 = vunpack.c.l.b16 %v1882
    %v2197 = vunpack.c.h.b16 %v1882
    %v2198 = vunpack.c.l.b16 %v1883
    %v2199 = vunpack.c.l.b16 %v1884
    %v2200 = vunpack.c.h.b16 %v1884
    %v2201 = vunpack.c.l.b16 %v1885
    %v2202 = vunpack.c.l.b16 %v1886
    %v2203 = vunpack.c.h.b16 %v1886
    %v2204 = vunpack.c.l.b16 %v1887
    %v2205 = vunpack.c.l.b16 %v1888
    %v2206 = vunpack.c.h.b16 %v1888
    %v2207 = vunpack.c.l.b16 %v1889
    %v2208 = vunpack.c.l.b16 %v1890
    %v2209 = vunpack.c.h.b16 %v1890
    %v2210 = vunpack.c.l.b16 %v1891
    %v2211 = vunpack.c.l.b16 %v1892
    %v2212 = vunpack.c.h.b16 %v1892
    %v2213 = vunpack.c.l.b16 %v1893
    %v2214 = vunpack.c.l.b16 %v1894
    %v2215 = vunpack.c.h.b16 %v1894
    %v2216 = vunpack.c.l.b16 %v1895
    %v2217 = vunpack.c.l.b16 %v1896
    %v2218 = vunpack.c.h.b16 %v1896
    %v2219 = vunpack.c.l.b16 %v1897
    %v2220 = vunpack.c.l.b16 %v1898
    %v2221 = vunpack.c.h.b16 %v1898
    %v2222 = vunpack.c.l.b16 %v1899
    %v2223 = vunpack.c.l.b16 %v1900
    %v2224 = vunpack.c.h.b16 %v1900
    %v2225 = vunpack.c.l.b16 %v1901
    %v2226 = vunpack.c.l.b16 %v1902
    %v2227 = vunpack.c.h.b16 %v1902
    %v2228 = vunpack.c.l.b16 %v1903
    %v2229 = vunpack.c.l.b16 %v1904
    %v2230 = vunpack.c.h.b16 %v1904
    %v2231 = vunpack.c.l.b16 %v1905
    %v2232 = vunpack.c.l.b16 %v1906
    %v2233 = vunpack.c.h.b16 %v1906
    %v2234 = vunpack.c.l.b16 %v1907
    %v2235 = vunpack.c.l.b16 %v1908
    %v2236 = vunpack.c.h.b16 %v1908
    %v2237 = vunpack.c.l.b16 %v1909
    %v2238 = vunpack.c.l.b16 %v1910
    %v2239 = vunpack.c.h.b16 %v1910
    %v2240 = vunpack.c.l.b16 %v1911
    %v2241 = vunpack.c.l.b16 %v1912
    %v2242 = vunpack.c.h.b16 %v1912
    %v2243 = vunpack.c.l.b16 %v1913
    %v2244 = vunpack.c.l.b16 %v1914
    %v2245 = vunpack.c.h.b16 %v1914
    %v2246 = vunpack.c.l.b16 %v1915
    %v2247 = vunpack.c.l.b16 %v1916
    %v2248 = vunpack.c.h.b16 %v1916
    %v2249 = vunpack.c.l.b16 %v1917
    %v2250 = vunpack.c.l.b16 %v1918
    %v2251 = vunpack.c.h.b16 %v1918
    %v2252 = vunpack.c.l.b16 %v1919
    %v2253 = vunpack.c.l.b16 %v1920
    %v2254 = vunpack.c.h.b16 %v1920
    %v2255 = vunpack.c.l.b16 %v1921
    %v2256 = vunpack.c.l.b16 %v1922
    %v2257 = vunpack.c.h.b16 %v1922
    %v2258 = vunpack.c.l.b16 %v1923
    %v2259 = vunpack.c.l.b16 %v1924
    %v2260 = vunpack.c.h.b16 %v1924
    %v2261 = vunpack.c.l.b16 %v1925
    %v2262 = vunpack.c.l.b16 %v1926
    %v2263 = vunpack.c.h.b16 %v1926
    %v2264 = vunpack.c.l.b16 %v1927
    %v2265 = vpack.c.b16 %v2076, %v2073
    %v2266 = vpack.c.b16 %v2077, %v2074
    %v2267 = vpack.c.b16 %v2078, %v2075
    %v2268 = vpack.c.b16 %v2082, %v2079
    %v2269 = vpack.c.b16 %v2083, %v2080
    %v2270 = vpack.c.b16 %v2084, %v2081
    %v2271 = vpack.c.b16 %v2088, %v2085
    %v2272 = vpack.c.b16 %v2089, %v2086
    %v2273 = vpack.c.b16 %v2090, %v2087
    %v2274 = vpack.c.b16 %v2094, %v2091
    %v2275 = vpack.c.b16 %v2095, %v2092
    %v2276 = vpack.c.b16 %v2096, %v2093
    %v2277 = vpack.c.b16 %v2100, %v2097
    %v2278 = vpack.c.b16 %v2101, %v2098
    %v2279 = vpack.c.b16 %v2102, %v2099
    %v2280 = vpack.c.b16 %v2106, %v2103
    %v2281 = vpack.c.b16 %v2107, %v2104
    %v2282 = vpack.c.b16 %v2108, %v2105
    %v2283 = vpack.c.b16 %v2112, %v2109
    %v2284 = vpack.c.b16 %v2113, %v2110
    %v2285 = vpack.c.b16 %v2114, %v2111
    %v2286 = vpack.c.b16 %v2118, %v2115
    %v2287 = vpack.c.b16 %v2119, %v2116
    %v2288 = vpack.c.b16 %v2120, %v2117
    %v2289 = vpack.c.b16 %v2124, %v2121
    %v2290 = vpack.c.b16 %v2125, %v2122
    %v2291 = vpack.c.b16 %v2126, %v2123
    %v2292 = vpack.c.b16 %v2130, %v2127
    %v2293 = vpack.c.b16 %v2131, %v2128
    %v2294 = vpack.c.b16 %v2132, %v2129
    %v2295 = vpack.c.b16 %v2136, %v2133
    %v2296 = vpack.c.b16 %v2137, %v2134
    %v2297 = vpack.c.b16 %v2138, %v2135
    %v2298 = vpack.c.b16 %v2142, %v2139
    %v2299 = vpack.c.b16 %v2143, %v2140
    %v2300 = vpack.c.b16 %v2144, %v2141
    %v2301 = vpack.c.b16 %v2148, %v2145
    %v2302 = vpack.c.b16 %v2149, %v2146
    %v2303 = vpack.c.b16 %v2150, %v2147
    %v2304 = vpack.c.b16 %v2154, %v2151
    %v2305 = vpack.c.b16 %v2155, %v2152
    %v2306 = vpack.c.b16 %v2156, %v2153
    %v2307 = vpack.c.b16 %v2160, %v2157
    %v2308 = vpack.c.b16 %v2161, %v2158
    %v2309 = vpack.c.b16 %v2162, %v2159
    %v2310 = vpack.c.b16 %v2166, %v2163
    %v2311 = vpack.c.b16 %v2167, %v2164
    %v2312 = vpack.c.b16 %v2168, %v2165
    %v2313 = vpack.c.b16 %v2172, %v2169
    %v2314 = vpack.c.b16 %v2173, %v2170
    %v2315 = vpack.c.b16 %v2174, %v2171
    %v2316 = vpack.c.b16 %v2178, %v2175
    %v2317 = vpack.c.b16 %v2179, %v2176
    %v2318 = vpack.c.b16 %v2180, %v2177
    %v2319 = vpack.c.b16 %v2184, %v2181
    %v2320 = vpack.c.b16 %v2185, %v2182
    %v2321 = vpack.c.b16 %v2186, %v2183
    %v2322 = vpack.c.b16 %v2190, %v2187
    %v2323 = vpack.c.b16 %v2191, %v2188
    %v2324 = vpack.c.b16 %v2192, %v2189
    %v2325 = vpack.c.b16 %v2196, %v2193
    %v2326 = vpack.c.b16 %v2197, %v2194
    %v2327 = vpack.c.b16 %v2198, %v2195
    %v2328 = vpack.c.b16 %v2202, %v2199
    %v2329 = vpack.c.b16 %v2203, %v2200
    %v2330 = vpack.c.b16 %v2204, %v2201
    %v2331 = vpack.c.b16 %v2208, %v2205
    %v2332 = vpack.c.b16 %v2209, %v2206
    %v2333 = vpack.c.b16 %v2210, %v2207
    %v2334 = vpack.c.b16 %v2214, %v2211
    %v2335 = vpack.c.b16 %v2215, %v2212
    %v2336 = vpack.c.b16 %v2216, %v2213
    %v2337 = vpack.c.b16 %v2220, %v2217
    %v2338 = vpack.c.b16 %v2221, %v2218
    %v2339 = vpack.c.b16 %v2222, %v2219
    %v2340 = vpack.c.b16 %v2226, %v2223
    %v2341 = vpack.c.b16 %v2227, %v2224
    %v2342 = vpack.c.b16 %v2228, %v2225
    %v2343 = vpack.c.b16 %v2232, %v2229
    %v2344 = vpack.c.b16 %v2233, %v2230
    %v2345 = vpack.c.b16 %v2234, %v2231
    %v2346 = vpack.c.b16 %v2238, %v2235
    %v2347 = vpack.c.b16 %v2239, %v2236
    %v2348 = vpack.c.b16 %v2240, %v2237
    %v2349 = vpack.c.b16 %v2244, %v2241
    %v2350 = vpack.c.b16 %v2245, %v2242
    %v2351 = vpack.c.b16 %v2246, %v2243
    %v2352 = vpack.c.b16 %v2250, %v2247
    %v2353 = vpack.c.b16 %v2251, %v2248
    %v2354 = vpack.c.b16 %v2252, %v2249
    %v2355 = vpack.c.b16 %v2256, %v2253
    %v2356 = vpack.c.b16 %v2257, %v2254
    %v2357 = vpack.c.b16 %v2258, %v2255
    %v2358 = vpack.c.b16 %v2262, %v2259
    %v2359 = vpack.c.b16 %v2263, %v2260
    %v2360 = vpack.c.b16 %v2264, %v2261
    %2457 = vmatprep.subr.bf16.mxu0 %v2266
    %2458 = vmatpush1.bf16.msra.mxu0 %v2265
    %2459 = vmatprep.subr.bf16.mxu0 %v2269
    %2460 = vmatpush1.bf16.msra.mxu0 %v2268
    %2461 = vmatprep.subr.bf16.mxu0 %v2272
    %2462 = vmatpush1.bf16.msra.mxu0 %v2271
    %2463 = vmatprep.subr.bf16.mxu0 %v2275
    %2464 = vmatpush1.bf16.msra.mxu0 %v2274
    %2465 = vmatprep.subr.bf16.mxu0 %v2278
    %2466 = vmatpush1.bf16.msra.mxu0 %v2277
    %2467 = vmatprep.subr.bf16.mxu0 %v2281
    %2468 = vmatpush1.bf16.msra.mxu0 %v2280
    %2469 = vmatprep.subr.bf16.mxu0 %v2284
    %2470 = vmatpush1.bf16.msra.mxu0 %v2283
    %2471 = vmatprep.subr.bf16.mxu0 %v2287
    %2472 = vmatpush1.bf16.msra.mxu0 %v2286
    %2473 = vmatprep.subr.bf16.mxu0 %v2290
    %2474 = vmatpush1.bf16.msra.mxu0 %v2289
    %2475 = vmatprep.subr.bf16.mxu0 %v2293
    %2476 = vmatpush1.bf16.msra.mxu0 %v2292
    %2477 = vmatprep.subr.bf16.mxu0 %v2296
    %2478 = vmatpush1.bf16.msra.mxu0 %v2295
    %2479 = vmatprep.subr.bf16.mxu0 %v2299
    %2480 = vmatpush1.bf16.msra.mxu0 %v2298
    %2481 = vmatprep.subr.bf16.mxu0 %v2302
    %2482 = vmatpush1.bf16.msra.mxu0 %v2301
    %2483 = vmatprep.subr.bf16.mxu0 %v2305
    %2484 = vmatpush1.bf16.msra.mxu0 %v2304
    %2485 = vmatprep.subr.bf16.mxu0 %v2308
    %2486 = vmatpush1.bf16.msra.mxu0 %v2307
    %2487 = vmatprep.subr.bf16.mxu0 %v2311
    %2488 = vmatpush1.bf16.msra.mxu0 %v2310
    %2489 = vmatprep.mubr.bf16.mxu0 %v1797
    %2490 = vmatmul.mubr.bf16.gmra.mrb[0].mxu0 %v1796
    %v2491 = vpop.f32.mrb[0].mxu0
    %v2492 = vadd.f32 %v1933, %v2491
    %v2493 = vpop.f32.mrb[0].mxu0
    %v2494 = vadd.f32 %v1937, %v2493
    %v2495 = vpop.f32.mrb[0].mxu0
    %v2496 = vpop.f32.mrb[0].mxu0
    %2497 = vdwg.mxu0
    %2498 = vmatprep.subr.bf16.mxu0 %v2314
    %2499 = vmatpush1.bf16.msra.mxu0 %v2313
    %2500 = vmatprep.subr.bf16.mxu0 %v2317
    %2501 = vmatpush1.bf16.msra.mxu0 %v2316
    %2502 = vmatprep.subr.bf16.mxu0 %v2320
    %2503 = vmatpush1.bf16.msra.mxu0 %v2319
    %2504 = vmatprep.subr.bf16.mxu0 %v2323
    %2505 = vmatpush1.bf16.msra.mxu0 %v2322
    %2506 = vmatprep.subr.bf16.mxu0 %v2326
    %2507 = vmatpush1.bf16.msra.mxu0 %v2325
    %2508 = vmatprep.subr.bf16.mxu0 %v2329
    %2509 = vmatpush1.bf16.msra.mxu0 %v2328
    %2510 = vmatprep.subr.bf16.mxu0 %v2332
    %2511 = vmatpush1.bf16.msra.mxu0 %v2331
    %2512 = vmatprep.subr.bf16.mxu0 %v2335
    %2513 = vmatpush1.bf16.msra.mxu0 %v2334
    %2514 = vmatprep.subr.bf16.mxu0 %v2338
    %2515 = vmatpush1.bf16.msra.mxu0 %v2337
    %2516 = vmatprep.subr.bf16.mxu0 %v2341
    %2517 = vmatpush1.bf16.msra.mxu0 %v2340
    %2518 = vmatprep.subr.bf16.mxu0 %v2344
    %2519 = vmatpush1.bf16.msra.mxu0 %v2343
    %2520 = vmatprep.subr.bf16.mxu0 %v2347
    %2521 = vmatpush1.bf16.msra.mxu0 %v2346
    %2522 = vmatprep.subr.bf16.mxu0 %v2350
    %2523 = vmatpush1.bf16.msra.mxu0 %v2349
    %2524 = vmatprep.subr.bf16.mxu0 %v2353
    %2525 = vmatpush1.bf16.msra.mxu0 %v2352
    %2526 = vmatprep.subr.bf16.mxu0 %v2356
    %2527 = vmatpush1.bf16.msra.mxu0 %v2355
    %2528 = vmatprep.subr.bf16.mxu0 %v2359
    %2529 = vmatpush1.bf16.msra.mxu0 %v2358
    %2530 = vmatprep.mubr.bf16.mxu0 %v1799
    %2531 = vmatmul.mubr.bf16.gmra.mrb[0].mxu0 %v1798
    %v2532 = vpop.f32.mrb[0].mxu0
    %v2533 = vadd.f32 %v2492, %v2532
    %v2534 = vpop.f32.mrb[0].mxu0
    %v2535 = vadd.f32 %v2494, %v2534
    %v2536 = vpop.f32.mrb[0].mxu0
    %v2537 = vpop.f32.mrb[0].mxu0
    %2538 = vdwg.mxu0
    %2539 = vmatprep.subr.bf16.mxu0 0
    %2540 = vmatpush1.bf16.msra.mxu0 %v2267
    %2541 = vmatprep.subr.bf16.mxu0 0
    %2542 = vmatpush1.bf16.msra.mxu0 %v2270
    %2543 = vmatprep.subr.bf16.mxu0 0
    %2544 = vmatpush1.bf16.msra.mxu0 %v2273
    %2545 = vmatprep.subr.bf16.mxu0 0
    %2546 = vmatpush1.bf16.msra.mxu0 %v2276
    %2547 = vmatprep.subr.bf16.mxu0 0
    %2548 = vmatpush1.bf16.msra.mxu0 %v2279
    %2549 = vmatprep.subr.bf16.mxu0 0
    %2550 = vmatpush1.bf16.msra.mxu0 %v2282
    %2551 = vmatprep.subr.bf16.mxu0 0
    %2552 = vmatpush1.bf16.msra.mxu0 %v2285
    %2553 = vmatprep.subr.bf16.mxu0 0
    %2554 = vmatpush1.bf16.msra.mxu0 %v2288
    %2555 = vmatprep.subr.bf16.mxu0 0
    %2556 = vmatpush1.bf16.msra.mxu0 %v2291
    %2557 = vmatprep.subr.bf16.mxu0 0
    %2558 = vmatpush1.bf16.msra.mxu0 %v2294
    %2559 = vmatprep.subr.bf16.mxu0 0
    %2560 = vmatpush1.bf16.msra.mxu0 %v2297
    %2561 = vmatprep.subr.bf16.mxu0 0
    %2562 = vmatpush1.bf16.msra.mxu0 %v2300
    %2563 = vmatprep.subr.bf16.mxu0 0
    %2564 = vmatpush1.bf16.msra.mxu0 %v2303
    %2565 = vmatprep.subr.bf16.mxu0 0
    %2566 = vmatpush1.bf16.msra.mxu0 %v2306
    %2567 = vmatprep.subr.bf16.mxu0 0
    %2568 = vmatpush1.bf16.msra.mxu0 %v2309
    %2569 = vmatprep.subr.bf16.mxu0 0
    %2570 = vmatpush1.bf16.msra.mxu0 %v2312
    %2571 = vmatprep.mubr.bf16.mxu0 %v1797
    %2572 = vmatmul.mubr.bf16.gmra.mrb[0].mxu0 %v1796
    %v2573 = vpop.f32.mrb[0].mxu0
    %v2574 = vadd.f32 %v1941, %v2573
    %v2575 = vpop.f32.mrb[0].mxu0
    %v2576 = vpop.f32.mrb[0].mxu0
    %v2577 = vpop.f32.mrb[0].mxu0
    %2578 = vdwg.mxu0
    %2579 = vmatprep.subr.bf16.mxu0 0
    %2580 = vmatpush1.bf16.msra.mxu0 %v2315
    %2581 = vmatprep.subr.bf16.mxu0 0
    %2582 = vmatpush1.bf16.msra.mxu0 %v2318
    %2583 = vmatprep.subr.bf16.mxu0 0
    %2584 = vmatpush1.bf16.msra.mxu0 %v2321
    %2585 = vmatprep.subr.bf16.mxu0 0
    %2586 = vmatpush1.bf16.msra.mxu0 %v2324
    %2587 = vmatprep.subr.bf16.mxu0 0
    %2588 = vmatpush1.bf16.msra.mxu0 %v2327
    %2589 = vmatprep.subr.bf16.mxu0 0
    %2590 = vmatpush1.bf16.msra.mxu0 %v2330
    %2591 = vmatprep.subr.bf16.mxu0 0
    %2592 = vmatpush1.bf16.msra.mxu0 %v2333
    %2593 = vmatprep.subr.bf16.mxu0 0
    %2594 = vmatpush1.bf16.msra.mxu0 %v2336
    %2595 = vmatprep.subr.bf16.mxu0 0
    %2596 = vmatpush1.bf16.msra.mxu0 %v2339
    %2597 = vmatprep.subr.bf16.mxu0 0
    %2598 = vmatpush1.bf16.msra.mxu0 %v2342
    %2599 = vmatprep.subr.bf16.mxu0 0
    %2600 = vmatpush1.bf16.msra.mxu0 %v2345
    %2601 = vmatprep.subr.bf16.mxu0 0
    %2602 = vmatpush1.bf16.msra.mxu0 %v2348
    %2603 = vmatprep.subr.bf16.mxu0 0
    %2604 = vmatpush1.bf16.msra.mxu0 %v2351
    %2605 = vmatprep.subr.bf16.mxu0 0
    %2606 = vmatpush1.bf16.msra.mxu0 %v2354
    %2607 = vmatprep.subr.bf16.mxu0 0
    %2608 = vmatpush1.bf16.msra.mxu0 %v2357
    %2609 = vmatprep.subr.bf16.mxu0 0
    %2610 = vmatpush1.bf16.msra.mxu0 %v2360
    %2611 = vmatprep.mubr.bf16.mxu0 %v1799
    %2612 = vmatmul.mubr.bf16.gmra.mrb[0].mxu0 %v1798
    %v2613 = vpop.f32.mrb[0].mxu0
    %v2614 = vadd.f32 %v2574, %v2613
    %v2615 = vpop.f32.mrb[0].mxu0
    %v2616 = vpop.f32.mrb[0].mxu0
    %v2617 = vpop.f32.mrb[0].mxu0
    %2618 = vdwg.mxu0
    %v2619 = vmax.f32 %v2533, 0.0
    %v2620 = vmax.f32 %v2535, 0.0
    %v2621 = vmax.f32 %v2614, 0.0
    %v2622 = vpack.c.bf16 %v2619, %v2619
    %v2623 = vpack.c.bf16 %v2620, %v2620
    %v2624 = vpack.c.bf16 %v2621, %v2621
    %v2625 = vld [vmem:[#allocation7] sm:$0xf]
    %v2626 = vld [vmem:[#allocation7 + $0x4] sm:$0xf]
    %v2627 = vld [vmem:[#allocation7 + $0x8] sm:$0xf]
    %v2628 = vld [vmem:[#allocation7 + $0xc] sm:$0xf]
    %v2629 = vld [vmem:[#allocation7 + $0x10] sm:$0xf]
    %v2630 = vld [vmem:[#allocation7 + $0x14] sm:$0xf]
    %v2631 = vld [vmem:[#allocation7 + $0x18] sm:$0xf]
    %v2632 = vld [vmem:[#allocation7 + $0x1c] sm:$0xf]
    %v2633 = vld [vmem:[#allocation7 + $0x20] sm:$0xf]
    %v2634 = vld [vmem:[#allocation7 + $0x24] sm:$0xf]
    %v2635 = vld [vmem:[#allocation7 + $0x28] sm:$0xf]
    %v2636 = vld [vmem:[#allocation7 + $0x2c] sm:$0xf]
    %v2637 = vld [vmem:[#allocation7 + $0x30] sm:$0xf]
    %v2638 = vld [vmem:[#allocation7 + $0x34] sm:$0xf]
    %v2639 = vld [vmem:[#allocation7 + $0x38] sm:$0xf]
    %v2640 = vld [vmem:[#allocation7 + $0x3c] sm:$0xf]
    %v2641 = vld [vmem:[#allocation7 + $0x40] sm:$0xf]
    %v2642 = vld [vmem:[#allocation7 + $0x44] sm:$0xf]
    %v2643 = vld [vmem:[#allocation7 + $0x48] sm:$0xf]
    %v2644 = vld [vmem:[#allocation7 + $0x4c] sm:$0xf]
    %v2645 = vld [vmem:[#allocation7 + $0x50] sm:$0xf]
    %v2646 = vld [vmem:[#allocation7 + $0x54] sm:$0xf]
    %v2647 = vld [vmem:[#allocation7 + $0x58] sm:$0xf]
    %v2648 = vld [vmem:[#allocation7 + $0x5c] sm:$0xf]
    %v2649 = vld [vmem:[#allocation7 + $0x60] sm:$0xf]
    %v2650 = vld [vmem:[#allocation7 + $0x64] sm:$0xf]
    %v2651 = vld [vmem:[#allocation7 + $0x68] sm:$0xf]
    %v2652 = vld [vmem:[#allocation7 + $0x6c] sm:$0xf]
    %v2653 = vld [vmem:[#allocation7 + $0x70] sm:$0xf]
    %v2654 = vld [vmem:[#allocation7 + $0x74] sm:$0xf]
    %v2655 = vld [vmem:[#allocation7 + $0x78] sm:$0xf]
    %v2656 = vld [vmem:[#allocation7 + $0x7c] sm:$0xf]
    %v2657 = vld [vmem:[#allocation7 + $0x80] sm:$0xf]
    %v2658 = vld [vmem:[#allocation7 + $0x84] sm:$0xf]
    %v2659 = vld [vmem:[#allocation7 + $0x88] sm:$0xf]
    %v2660 = vld [vmem:[#allocation7 + $0x8c] sm:$0xf]
    %v2661 = vld [vmem:[#allocation7 + $0x90] sm:$0xf]
    %v2662 = vld [vmem:[#allocation7 + $0x94] sm:$0xf]
    %v2663 = vld [vmem:[#allocation7 + $0x98] sm:$0xf]
    %v2664 = vld [vmem:[#allocation7 + $0x9c] sm:$0xf]
    %v2665 = vld [vmem:[#allocation7 + $0xa0] sm:$0xf]
    %v2666 = vld [vmem:[#allocation7 + $0xa4] sm:$0xf]
    %v2667 = vld [vmem:[#allocation7 + $0xa8] sm:$0xf]
    %v2668 = vld [vmem:[#allocation7 + $0xac] sm:$0xf]
    %v2669 = vld [vmem:[#allocation7 + $0xb0] sm:$0xf]
    %v2670 = vld [vmem:[#allocation7 + $0xb4] sm:$0xf]
    %v2671 = vld [vmem:[#allocation7 + $0xb8] sm:$0xf]
    %v2672 = vld [vmem:[#allocation7 + $0xbc] sm:$0xf]
    %v2673 = vld [vmem:[%s8] sm:$0x1]
    %v2675 = vlaneseq
    %v2676 = vshrl.u32 %v2675, 7
    %v2677 = vsub.s32 0, %v2676
    %v2678 = vrot.slane %v2673, %v2677
    %v2728 = vunpack.c.l.b16 %v2625
    %v2729 = vunpack.c.l.b16 %v2626
    %v2730 = vunpack.c.l.b16 %v2627
    %v2731 = vunpack.c.l.b16 %v2628
    %v2732 = vunpack.c.l.b16 %v2629
    %v2733 = vunpack.c.l.b16 %v2630
    %v2734 = vunpack.c.l.b16 %v2631
    %v2735 = vunpack.c.l.b16 %v2632
    %v2736 = vunpack.c.l.b16 %v2633
    %v2737 = vunpack.c.l.b16 %v2634
    %v2738 = vunpack.c.l.b16 %v2635
    %v2739 = vunpack.c.l.b16 %v2636
    %v2740 = vunpack.c.l.b16 %v2637
    %v2741 = vunpack.c.l.b16 %v2638
    %v2742 = vunpack.c.l.b16 %v2639
    %v2743 = vunpack.c.l.b16 %v2640
    %v2744 = vunpack.c.l.b16 %v2641
    %v2745 = vunpack.c.l.b16 %v2642
    %v2746 = vunpack.c.l.b16 %v2643
    %v2747 = vunpack.c.l.b16 %v2644
    %v2748 = vunpack.c.l.b16 %v2645
    %v2749 = vunpack.c.l.b16 %v2646
    %v2750 = vunpack.c.l.b16 %v2647
    %v2751 = vunpack.c.l.b16 %v2648
    %v2752 = vunpack.c.l.b16 %v2649
    %v2753 = vunpack.c.l.b16 %v2650
    %v2754 = vunpack.c.l.b16 %v2651
    %v2755 = vunpack.c.l.b16 %v2652
    %v2756 = vunpack.c.l.b16 %v2653
    %v2757 = vunpack.c.l.b16 %v2654
    %v2758 = vunpack.c.l.b16 %v2655
    %v2759 = vunpack.c.l.b16 %v2656
    %v2760 = vunpack.c.l.b16 %v2657
    %v2761 = vunpack.c.l.b16 %v2658
    %v2762 = vunpack.c.l.b16 %v2659
    %v2763 = vunpack.c.l.b16 %v2660
    %v2764 = vunpack.c.l.b16 %v2661
    %v2765 = vunpack.c.l.b16 %v2662
    %v2766 = vunpack.c.l.b16 %v2663
    %v2767 = vunpack.c.l.b16 %v2664
    %v2768 = vunpack.c.l.b16 %v2665
    %v2769 = vunpack.c.l.b16 %v2666
    %v2770 = vunpack.c.l.b16 %v2667
    %v2771 = vunpack.c.l.b16 %v2668
    %v2772 = vunpack.c.l.b16 %v2669
    %v2773 = vunpack.c.l.b16 %v2670
    %v2774 = vunpack.c.l.b16 %v2671
    %v2775 = vunpack.c.l.b16 %v2672
    %v2776 = vpack.c.b16 %v2729, %v2728
    %v2777 = vpack.c.b16 %v2731, %v2730
    %v2778 = vpack.c.b16 %v2733, %v2732
    %v2779 = vpack.c.b16 %v2735, %v2734
    %v2780 = vpack.c.b16 %v2737, %v2736
    %v2781 = vpack.c.b16 %v2739, %v2738
    %v2782 = vpack.c.b16 %v2741, %v2740
    %v2783 = vpack.c.b16 %v2743, %v2742
    %v2784 = vpack.c.b16 %v2745, %v2744
    %v2785 = vpack.c.b16 %v2747, %v2746
    %v2786 = vpack.c.b16 %v2749, %v2748
    %v2787 = vpack.c.b16 %v2751, %v2750
    %v2788 = vpack.c.b16 %v2753, %v2752
    %v2789 = vpack.c.b16 %v2755, %v2754
    %v2790 = vpack.c.b16 %v2757, %v2756
    %v2791 = vpack.c.b16 %v2759, %v2758
    %v2792 = vpack.c.b16 %v2761, %v2760
    %v2793 = vpack.c.b16 %v2763, %v2762
    %v2794 = vpack.c.b16 %v2765, %v2764
    %v2795 = vpack.c.b16 %v2767, %v2766
    %v2796 = vpack.c.b16 %v2769, %v2768
    %v2797 = vpack.c.b16 %v2771, %v2770
    %v2798 = vpack.c.b16 %v2773, %v2772
    %v2799 = vpack.c.b16 %v2775, %v2774
    %2824 = vmatprep.subr.bf16.mxu0 0
    %2825 = vmatpush1.bf16.msra.mxu0 %v2776
    %2826 = vmatprep.subr.bf16.mxu0 0
    %2827 = vmatpush1.bf16.msra.mxu0 %v2777
    %2828 = vmatprep.subr.bf16.mxu0 0
    %2829 = vmatpush1.bf16.msra.mxu0 %v2778
    %2830 = vmatprep.subr.bf16.mxu0 0
    %2831 = vmatpush1.bf16.msra.mxu0 %v2779
    %2832 = vmatprep.subr.bf16.mxu0 0
    %2833 = vmatpush1.bf16.msra.mxu0 %v2780
    %2834 = vmatprep.subr.bf16.mxu0 0
    %2835 = vmatpush1.bf16.msra.mxu0 %v2781
    %2836 = vmatprep.subr.bf16.mxu0 0
    %2837 = vmatpush1.bf16.msra.mxu0 %v2782
    %2838 = vmatprep.subr.bf16.mxu0 0
    %2839 = vmatpush1.bf16.msra.mxu0 %v2783
    %2840 = vmatprep.subr.bf16.mxu0 0
    %2841 = vmatpush1.bf16.msra.mxu0 %v2784
    %2842 = vmatprep.subr.bf16.mxu0 0
    %2843 = vmatpush1.bf16.msra.mxu0 %v2785
    %2844 = vmatprep.subr.bf16.mxu0 0
    %2845 = vmatpush1.bf16.msra.mxu0 %v2786
    %2846 = vmatprep.subr.bf16.mxu0 0
    %2847 = vmatpush1.bf16.msra.mxu0 %v2787
    %2848 = vmatprep.subr.bf16.mxu0 0
    %2849 = vmatpush1.bf16.msra.mxu0 %v2788
    %2850 = vmatprep.subr.bf16.mxu0 0
    %2851 = vmatpush1.bf16.msra.mxu0 %v2789
    %2852 = vmatprep.subr.bf16.mxu0 0
    %2853 = vmatpush1.bf16.msra.mxu0 %v2790
    %2854 = vmatprep.subr.bf16.mxu0 0
    %2855 = vmatpush1.bf16.msra.mxu0 %v2791
    %2856 = vmatprep.mubr.bf16.mxu0 %v2623
    %2857 = vmatmul.mubr.bf16.gmra.mrb[0].mxu0 %v2622
    %v2858 = vpop.f32.mrb[0].mxu0
    %v2859 = vadd.f32 %v2678, %v2858
    %v2860 = vpop.f32.mrb[0].mxu0
    %v2861 = vpop.f32.mrb[0].mxu0
    %v2862 = vpop.f32.mrb[0].mxu0
    %2863 = vdwg.mxu0
    %2864 = vmatprep.subr.bf16.mxu0 0
    %2865 = vmatpush1.bf16.msra.mxu0 %v2792
    %2866 = vmatprep.subr.bf16.mxu0 0
    %2867 = vmatpush1.bf16.msra.mxu0 %v2793
    %2868 = vmatprep.subr.bf16.mxu0 0
    %2869 = vmatpush1.bf16.msra.mxu0 %v2794
    %2870 = vmatprep.subr.bf16.mxu0 0
    %2871 = vmatpush1.bf16.msra.mxu0 %v2795
    %2872 = vmatprep.subr.bf16.mxu0 0
    %2873 = vmatpush1.bf16.msra.mxu0 %v2796
    %2874 = vmatprep.subr.bf16.mxu0 0
    %2875 = vmatpush1.bf16.msra.mxu0 %v2797
    %2876 = vmatprep.subr.bf16.mxu0 0
    %2877 = vmatpush1.bf16.msra.mxu0 %v2798
    %2878 = vmatprep.subr.bf16.mxu0 0
    %2879 = vmatpush1.bf16.msra.mxu0 %v2799
    %2880 = vmatprep.subr.bf16.mxu0 0
    %2881 = vmatpush1.bf16.msra.mxu0 0
    %2882 = vmatprep.subr.bf16.mxu0 0
    %2883 = vmatpush1.bf16.msra.mxu0 0
    %2884 = vmatprep.subr.bf16.mxu0 0
    %2885 = vmatpush1.bf16.msra.mxu0 0
    %2886 = vmatprep.subr.bf16.mxu0 0
    %2887 = vmatpush1.bf16.msra.mxu0 0
    %2888 = vmatprep.subr.bf16.mxu0 0
    %2889 = vmatpush1.bf16.msra.mxu0 0
    %2890 = vmatprep.subr.bf16.mxu0 0
    %2891 = vmatpush1.bf16.msra.mxu0 0
    %2892 = vmatprep.subr.bf16.mxu0 0
    %2893 = vmatpush1.bf16.msra.mxu0 0
    %2894 = vmatprep.subr.bf16.mxu0 0
    %2895 = vmatpush1.bf16.msra.mxu0 0
    %2896 = vmatprep.mubr.bf16.mxu0 0
    %2897 = vmatmul.mubr.bf16.gmra.mrb[0].mxu0 %v2624
    %v2898 = vpop.f32.mrb[0].mxu0
    %v2899 = vadd.f32 %v2859, %v2898
    %v2900 = vpop.f32.mrb[0].mxu0
    %v2901 = vpop.f32.mrb[0].mxu0
    %v2902 = vpop.f32.mrb[0].mxu0
    %2903 = vdwg.mxu0
    %v2904 = vmax.f32 %v2899, 0.0
    %v2905 = vpack.c.bf16 %v2904, %v2904
    %v2906 = vld [vmem:[#allocation9] sm:$0xf]
    %v2907 = vld [vmem:[#allocation9 + $0x4] sm:$0xf]
    %v2908 = vld [vmem:[#allocation9 + $0x8] sm:$0xf]
    %v2909 = vld [vmem:[#allocation9 + $0xc] sm:$0xf]
    %v2910 = vld [vmem:[#allocation9 + $0x10] sm:$0xf]
    %v2911 = vld [vmem:[#allocation9 + $0x14] sm:$0xf]
    %v2912 = vld [vmem:[#allocation9 + $0x18] sm:$0xf]
    %v2913 = vld [vmem:[#allocation9 + $0x1c] sm:$0xf]
    %v2914 = vld [vmem:[#allocation9 + $0x20] sm:$0xf]
    %v2915 = vld [vmem:[#allocation9 + $0x24] sm:$0xf]
    %v2916 = vld [vmem:[#allocation9 + $0x28] sm:$0xf]
    %v2917 = vld [vmem:[#allocation9 + $0x2c] sm:$0xf]
    %v2918 = vld [vmem:[#allocation9 + $0x30] sm:$0xf]
    %v2919 = vld [vmem:[#allocation9 + $0x34] sm:$0xf]
    %v2920 = vld [vmem:[#allocation9 + $0x38] sm:$0xf]
    %v2921 = vld [vmem:[#allocation9 + $0x3c] sm:$0xf]
    %v2922 = vld [vmem:[%s10] sm:$0x1]
    %v2924 = vlaneseq
    %v2925 = vshrl.u32 %v2924, 7
    %v2926 = vsub.s32 0, %v2925
    %v2927 = vrot.slane %v2922, %v2926
    %v2945 = vunpack.c.l.b16 %v2906
    %v2946 = vunpack.c.l.b16 %v2907
    %v2947 = vunpack.c.l.b16 %v2908
    %v2948 = vunpack.c.l.b16 %v2909
    %v2949 = vunpack.c.l.b16 %v2910
    %v2950 = vunpack.c.l.b16 %v2911
    %v2951 = vunpack.c.l.b16 %v2912
    %v2952 = vunpack.c.l.b16 %v2913
    %v2953 = vunpack.c.l.b16 %v2914
    %v2954 = vunpack.c.l.b16 %v2915
    %v2955 = vunpack.c.l.b16 %v2916
    %v2956 = vunpack.c.l.b16 %v2917
    %v2957 = vunpack.c.l.b16 %v2918
    %v2958 = vunpack.c.l.b16 %v2919
    %v2959 = vunpack.c.l.b16 %v2920
    %v2960 = vunpack.c.l.b16 %v2921
    %v2961 = vpack.c.b16 %v2946, %v2945
    %v2962 = vpack.c.b16 %v2948, %v2947
    %v2963 = vpack.c.b16 %v2950, %v2949
    %v2964 = vpack.c.b16 %v2952, %v2951
    %v2965 = vpack.c.b16 %v2954, %v2953
    %v2966 = vpack.c.b16 %v2956, %v2955
    %v2967 = vpack.c.b16 %v2958, %v2957
    %v2968 = vpack.c.b16 %v2960, %v2959
    %2977 = vmatprep.subr.bf16.mxu0 0
    %2978 = vmatpush1.bf16.msra.mxu0 %v2961
    %2979 = vmatprep.subr.bf16.mxu0 0
    %2980 = vmatpush1.bf16.msra.mxu0 %v2962
    %2981 = vmatprep.subr.bf16.mxu0 0
    %2982 = vmatpush1.bf16.msra.mxu0 %v2963
    %2983 = vmatprep.subr.bf16.mxu0 0
    %2984 = vmatpush1.bf16.msra.mxu0 %v2964
    %2985 = vmatprep.subr.bf16.mxu0 0
    %2986 = vmatpush1.bf16.msra.mxu0 %v2965
    %2987 = vmatprep.subr.bf16.mxu0 0
    %2988 = vmatpush1.bf16.msra.mxu0 %v2966
    %2989 = vmatprep.subr.bf16.mxu0 0
    %2990 = vmatpush1.bf16.msra.mxu0 %v2967
    %2991 = vmatprep.subr.bf16.mxu0 0
    %2992 = vmatpush1.bf16.msra.mxu0 %v2968
    %2993 = vmatprep.subr.bf16.mxu0 0
    %2994 = vmatpush1.bf16.msra.mxu0 0
    %2995 = vmatprep.subr.bf16.mxu0 0
    %2996 = vmatpush1.bf16.msra.mxu0 0
    %2997 = vmatprep.subr.bf16.mxu0 0
    %2998 = vmatpush1.bf16.msra.mxu0 0
    %2999 = vmatprep.subr.bf16.mxu0 0
    %3000 = vmatpush1.bf16.msra.mxu0 0
    %3001 = vmatprep.subr.bf16.mxu0 0
    %3002 = vmatpush1.bf16.msra.mxu0 0
    %3003 = vmatprep.subr.bf16.mxu0 0
    %3004 = vmatpush1.bf16.msra.mxu0 0
    %3005 = vmatprep.subr.bf16.mxu0 0
    %3006 = vmatpush1.bf16.msra.mxu0 0
    %3007 = vmatprep.subr.bf16.mxu0 0
    %3008 = vmatpush1.bf16.msra.mxu0 0
    %3009 = vmatprep.mubr.bf16.mxu0 0
    %3010 = vmatmul.mubr.bf16.gmra.mrb[0].mxu0 %v2905
    %v3011 = vpop.f32.mrb[0].mxu0
    %v3012 = vadd.f32 %v2927, %v3011
    %v3013 = vpop.f32.mrb[0].mxu0
    %v3014 = vpop.f32.mrb[0].mxu0
    %v3015 = vpop.f32.mrb[0].mxu0
    %3016 = vdwg.mxu0
    %v3017 = vmax.f32 %v3012, 0.0
    %v3018 = vpack.c.bf16 %v3017, %v3017
    %v3019 = vld [vmem:[#allocation10] sm:$0xf]
    %v3020 = vld [vmem:[#allocation10 + $0x4] sm:$0xf]
    %v3021 = vld [vmem:[#allocation10 + $0x8] sm:$0xf]
    %v3022 = vld [vmem:[#allocation10 + $0xc] sm:$0xf]
    %v3023 = vld [vmem:[#allocation10 + $0x10] sm:$0xf]
    %v3024 = vld [vmem:[#allocation10 + $0x14] sm:$0xf]
    %v3025 = vld [vmem:[#allocation10 + $0x18] sm:$0xf]
    %v3026 = vld [vmem:[#allocation10 + $0x1c] sm:$0xf]
    %v3027 = vld [vmem:[#allocation10 + $0x20] sm:$0xf]
    %v3028 = vld [vmem:[#allocation10 + $0x24] sm:$0xf]
    %v3029 = vld [vmem:[#allocation10 + $0x28] sm:$0xf]
    %v3030 = vld [vmem:[#allocation10 + $0x2c] sm:$0xf]
    %v3031 = vld [vmem:[#allocation10 + $0x30] sm:$0xf]
    %v3032 = vld [vmem:[#allocation10 + $0x34] sm:$0xf]
    %v3033 = vld [vmem:[#allocation10 + $0x38] sm:$0xf]
    %v3034 = vld [vmem:[#allocation10 + $0x3c] sm:$0xf]
    %v3035 = vld [vmem:[%s12] sm:$0x1]
    %v3037 = vlaneseq
    %v3038 = vshrl.u32 %v3037, 7
    %v3039 = vsub.s32 0, %v3038
    %v3040 = vrot.slane %v3035, %v3039
    %v3058 = vunpack.c.l.b16 %v3019
    %v3059 = vunpack.c.l.b16 %v3020
    %v3060 = vunpack.c.l.b16 %v3021
    %v3061 = vunpack.c.l.b16 %v3022
    %v3062 = vunpack.c.l.b16 %v3023
    %v3063 = vunpack.c.l.b16 %v3024
    %v3064 = vunpack.c.l.b16 %v3025
    %v3065 = vunpack.c.l.b16 %v3026
    %v3066 = vunpack.c.l.b16 %v3027
    %v3067 = vunpack.c.l.b16 %v3028
    %v3068 = vunpack.c.l.b16 %v3029
    %v3069 = vunpack.c.l.b16 %v3030
    %v3070 = vunpack.c.l.b16 %v3031
    %v3071 = vunpack.c.l.b16 %v3032
    %v3072 = vunpack.c.l.b16 %v3033
    %v3073 = vunpack.c.l.b16 %v3034
    %v3074 = vpack.c.b16 %v3059, %v3058
    %v3075 = vpack.c.b16 %v3061, %v3060
    %v3076 = vpack.c.b16 %v3063, %v3062
    %v3077 = vpack.c.b16 %v3065, %v3064
    %v3078 = vpack.c.b16 %v3067, %v3066
    %v3079 = vpack.c.b16 %v3069, %v3068
    %v3080 = vpack.c.b16 %v3071, %v3070
    %v3081 = vpack.c.b16 %v3073, %v3072
    %3090 = vmatprep.subr.bf16.mxu0 0
    %3091 = vmatpush1.bf16.msra.mxu0 %v3074
    %3092 = vmatprep.subr.bf16.mxu0 0
    %3093 = vmatpush1.bf16.msra.mxu0 %v3075
    %3094 = vmatprep.subr.bf16.mxu0 0
    %3095 = vmatpush1.bf16.msra.mxu0 %v3076
    %3096 = vmatprep.subr.bf16.mxu0 0
    %3097 = vmatpush1.bf16.msra.mxu0 %v3077
    %3098 = vmatprep.subr.bf16.mxu0 0
    %3099 = vmatpush1.bf16.msra.mxu0 %v3078
    %3100 = vmatprep.subr.bf16.mxu0 0
    %3101 = vmatpush1.bf16.msra.mxu0 %v3079
    %3102 = vmatprep.subr.bf16.mxu0 0
    %3103 = vmatpush1.bf16.msra.mxu0 %v3080
    %3104 = vmatprep.subr.bf16.mxu0 0
    %3105 = vmatpush1.bf16.msra.mxu0 %v3081
    %3106 = vmatprep.subr.bf16.mxu0 0
    %3107 = vmatpush1.bf16.msra.mxu0 0
    %3108 = vmatprep.subr.bf16.mxu0 0
    %3109 = vmatpush1.bf16.msra.mxu0 0
    %3110 = vmatprep.subr.bf16.mxu0 0
    %3111 = vmatpush1.bf16.msra.mxu0 0
    %3112 = vmatprep.subr.bf16.mxu0 0
    %3113 = vmatpush1.bf16.msra.mxu0 0
    %3114 = vmatprep.subr.bf16.mxu0 0
    %3115 = vmatpush1.bf16.msra.mxu0 0
    %3116 = vmatprep.subr.bf16.mxu0 0
    %3117 = vmatpush1.bf16.msra.mxu0 0
    %3118 = vmatprep.subr.bf16.mxu0 0
    %3119 = vmatpush1.bf16.msra.mxu0 0
    %3120 = vmatprep.subr.bf16.mxu0 0
    %3121 = vmatpush1.bf16.msra.mxu0 0
    %3122 = vmatprep.mubr.bf16.mxu0 0
    %3123 = vmatmul.mubr.bf16.gmra.mrb[0].mxu0 %v3018
    %v3124 = vpop.f32.mrb[0].mxu0
    %v3125 = vadd.f32 %v3040, %v3124
    %v3126 = vpop.f32.mrb[0].mxu0
    %v3127 = vpop.f32.mrb[0].mxu0
    %v3128 = vpop.f32.mrb[0].mxu0
    %3129 = vdwg.mxu0
    %v3130 = vlaneseq
    %v3131 = vand.u32 %v3130, 127
    %vm3132 = vcmp.lt.s32.totalorder %v3131, 4
    %v3133 = vsel %vm3132, %v3125, -inf
    %3134 = vmax.xlane.f32.xlu0 %v3133
    %v3135 = vpop.xlane.xlu0 %3134
    %v3136 = vsub.f32 %v3133, %v3135
    %v3137 = vmul.f32 %v3136, 1.442695
    %v3138 = vpow.pop %v3137
    %3139 = vadd.xlane.f32.xlu0 %v3138
    %v3140 = vpop.xlane.xlu0 %3139
    %v3141 = vlog2.pop %v3140
    %v3142 = vmul.f32 %v3141, 0.6931472
    %v3143 = vsub.f32 %v3136, %v3142
    %3144 = vst [vmem:[%s13] sm:$0xff] %v3143
    // Predicated region
    $region78: #{wide_basic_net_forward.1} parent=1 // pred_check
      _
    $region79: #{wide_basic_net_forward.1} parent=1 // pred_check_branch
      %3146 = sbr.rel (0) target = $region81
    $region80: #{wide_basic_net_forward.1} parent=1 // pred_region
      _
    $region81: #{wide_basic_net_forward.1} parent=1 // pred_fallthru
      _
    // Predicated region
    $region82: #{wide_basic_net_forward.1} parent=1 // pred_check
      _
    $region83: #{wide_basic_net_forward.1} parent=1 // pred_check_branch
      %3148 = sbr.rel (0) target = $region85
    $region84: #{wide_basic_net_forward.1} parent=1 // pred_region
      _
    $region85: #{wide_basic_net_forward.1} parent=1 // pred_fallthru
      _
    %3149 = vsyncpa [#allocation3], 1
    %3150 = vsyncpa [#allocation5], 1
    %3151 = vsyncpa [#allocation8], 1
    %3152 = vsyncpa [#allocation11], 1

</llo_original>
